<compile_context>
chip_gen: v6e
topology: v6e:2x2x1
jax: 0.10.0
libtpu: 0.0.40
codegen_flags: <defaults>
</compile_context>

<pallas_src>
import jax
import jax.numpy as jnp
from jax.experimental import pallas as pl
from jax.experimental.pallas import tpu as pltpu

# ----- static config (small demo sizes consistent with the module) -----
SDIM = 128          # cfg['sentence_emb_dim']  (torch default 512, shrunk for demo)
SODIM = 128         # cfg['sentence_emb_odim']
NOISE_LEVEL = 0.04  # cfg['noise_level']
H1, H2 = 256, 128   # fixed hidden sizes of MLP (fc1/fc2/fc3/fc4)

# single concatenated f32 bias buffer layout
_BIAS_SIZES = (("b1c", 2 * H1),
               ("m1b2", H2), ("m1b3", H1), ("m1b4", SDIM),
               ("m2b2", H2), ("m2b3", H1), ("m2b4", SDIM),
               ("fb1", 2 * SDIM), ("fb2", SODIM))
BIAS_OFF = {}
_o = 0
for _name, _n in _BIAS_SIZES:
    BIAS_OFF[_name] = (_o, _n)
    _o += _n
BIAS_TOTAL = _o   # 1920 (multiple of 128 -> lane aligned)

MAX_ROWS = 2048   # rows (= bm*tt) per grid step; keeps double-buffered inputs plus
                  # intermediates well under ~20 MB -> fits v7x's 64 MiB VMEM per TC


# ---------------------------------------------------------------------------
# fused kernel: noise_func + selector(mean pool) + cosine + sen_fc
# ---------------------------------------------------------------------------
def lgi_fused_kernel(x_ref, eps_ref,
                     w1c, m1w2, m1w3, m1w4, m2w2, m2w3, m2w4, fw1, fw2,
                     b_ref,
                     emb_ref, cos_ref,
                     sel_acc, sum_acc):
    t = pl.program_id(1)
    num_t = pl.num_programs(1)

    @pl.when(t == 0)
    def _():
        sel_acc[...] = jnp.zeros_like(sel_acc)
        sum_acc[...] = jnp.zeros_like(sum_acc)

    def bias(name):
        o, n = BIAS_OFF[name]
        return b_ref[:, o:o + n]

    x3 = x_ref[...]                                   # (bm, tt, D) f32
    bm, tt, D = x3.shape
    rows = bm * tt
    x = x3.reshape(rows, D)
    eps = eps_ref[...].reshape(rows, D)

    def dense(a_bf16, w_ref, b):                      # bf16 matmul, f32 accumulation
        return jnp.dot(a_bf16, w_ref[...], preferred_element_type=jnp.float32) + b

    def relu_bf16(v):                                 # activations stay bf16
        return jnp.maximum(v, 0.0).astype(jnp.bfloat16)

    x_bf = x.astype(jnp.bfloat16)

    # --- mlp1 / mlp2, layer 1 fused (shared input x): (rows, 2*H1) ---
    h1 = relu_bf16(dense(x_bf, w1c, bias("b1c")))
    h_var = h1[:, :H1]
    h_mu = h1[:, H1:]

    def mlp_tail(h, w2, w3, w4, b2, b3, b4):
        h = relu_bf16(dense(h, w2, bias(b2)))
        h = relu_bf16(dense(h, w3, bias(b3)))
        return jnp.maximum(dense(h, w4, bias(b4)), 0.0)     # final layer in f32

    var = mlp_tail(h_var, m1w2, m1w3, m1w4, "m1b2", "m1b3", "m1b4")
    mu = mlp_tail(h_mu, m2w2, m2w3, m2w4, "m2b2", "m2b3", "m2b4")

    std = jnp.exp(0.5 * var)
    noise = eps * std + mu

    def l2n(v):
        # matches torch x / x.norm(dim=-1, keepdim=True) (no epsilon)
        return v * jax.lax.rsqrt(jnp.sum(v * v, axis=-1, keepdims=True))

    x_n = l2n(x)
    noise_out = l2n((1.0 - NOISE_LEVEL) * x_n + NOISE_LEVEL * l2n(noise))

    # --- temporal accumulation (selector approximated by mean pooling) ---
    sel_acc[...] += jnp.sum(noise_out.reshape(bm, tt, D), axis=1)
    sum_acc[...] += jnp.sum(x3, axis=1)               # raw clip feats

    @pl.when(t == num_t - 1)
    def _():
        # TODO(synk): ATPSelectorModel / ATPConfig are not defined in the reference
        # source; the selector is approximated by temporal mean pooling (the mean
        # divisor cancels under L2 normalization, so the sums are normalized directly).
        sel_n = l2n(sel_acc[...])
        sum_n = l2n(sum_acc[...])

        # cosine of two unit-norm vectors: plain dot product
        cos = jnp.sum(sum_n * sel_n, axis=-1, keepdims=True)     # (bm, 1)
        cos_ref[...] = jnp.broadcast_to(cos, cos_ref.shape)      # lane-dense store

        # sen_fc: Linear(D -> 2D) + ReLU + Linear(2D -> SODIM) + ReLU
        h = relu_bf16(dense(sel_n.astype(jnp.bfloat16), fw1, bias("fb1")))
        emb_ref[...] = jnp.maximum(dense(h, fw2, bias("fb2")), 0.0)


# ---------------------------------------------------------------------------
# tiling / parameter preparation
# ---------------------------------------------------------------------------
def _choose_tiles(B, T, max_rows=MAX_ROWS):
    """Pick (bm, tt). bm is a multiple of 8; when B >= 16 it leaves >= 2 programs on
    the parallel batch axis (v7x megacore).  tt is as large as the row budget allows
    (full T when it fits), multiple of 8 or full."""
    if B % 8 != 0:
        bm = B
    else:
        limit = B // 2 if B >= 16 else B      # >= 2 batch programs when B >= 16
        bm = 8
        cand = 8
        while cand <= limit:
            if B % cand == 0 and cand * 8 <= max_rows:
                bm = cand
            cand += 8
    if T <= 8 or T % 8 != 0:
        tt = T
    else:
        want = max(8, max_rows // max(bm, 1))
        if want >= T:
            tt = T
        else:
            tt = (want // 8) * 8
            while tt > 8 and T % tt != 0:
                tt -= 8
            tt = max(tt, 8)
    return bm, tt


def _prepare_weights(mlp1_p, mlp2_p, sen_fc_p):
    """bf16 weights (MXU inputs); mlp1/mlp2 layer-1 fused; all biases in one f32 buf."""
    m1w1, m1b1, m1w2, m1b2, m1w3, m1b3, m1w4, m1b4 = mlp1_p
    m2w1, m2b1, m2w2, m2b2, m2w3, m2b3, m2w4, m2b4 = mlp2_p
    fw1, fb1, fw2, fb2 = sen_fc_p
    bf = lambda a: a.astype(jnp.bfloat16)
    weights = (bf(jnp.concatenate([m1w1, m2w1], axis=1)),   # (D, 2*H1) fused layer-1
               bf(m1w2), bf(m1w3), bf(m1w4),
               bf(m2w2), bf(m2w3), bf(m2w4),
               bf(fw1), bf(fw2))
    biases = jnp.concatenate(
        [jnp.concatenate([m1b1, m2b1], axis=1),
         m1b2, m1b3, m1b4, m2b2, m2b3, m2b4, fb1, fb2], axis=1).astype(jnp.float32)
    assert biases.shape == (1, BIAS_TOTAL)
    return weights, biases


# ---------------------------------------------------------------------------
# full training-mode forward of LanguageFree (single fused pallas_call)
# ---------------------------------------------------------------------------
def language_free_forward(clip_vid_feats, eps, mlp1_p, mlp2_p, sen_fc_p):
    B, T, D = clip_vid_feats.shape
    assert D == SDIM
    assert eps.shape == (B, T, D)

    # pad batch to a multiple of 8 -> sublane-dense blocks / unmasked stores
    Bp = ((B + 7) // 8) * 8
    if Bp != B:
        pad = ((0, Bp - B), (0, 0), (0, 0))
        x = jnp.pad(clip_vid_feats, pad, constant_values=1.0)   # nonzero: avoids NaN rows
        eps_p = jnp.pad(eps, pad, constant_values=0.0)
    else:
        x, eps_p = clip_vid_feats, eps

    bm, tt = _choose_tiles(Bp, T)
    assert Bp % bm == 0 and T % tt == 0

    weights, biases = _prepare_weights(mlp1_p, mlp2_p, sen_fc_p)

    x_spec = pl.BlockSpec((bm, tt, D), lambda i, t: (i, t, 0))
    w_specs = [pl.BlockSpec(w.shape, lambda i, t: (0, 0)) for w in weights]
    b_spec = pl.BlockSpec(biases.shape, lambda i, t: (0, 0))
    emb_spec = pl.BlockSpec((bm, SODIM), lambda i, t: (i, 0))
    cos_spec = pl.BlockSpec((bm, 128), lambda i, t: (i, 0))

    emb, cos = pl.pallas_call(
        lgi_fused_kernel,
        out_shape=(jax.ShapeDtypeStruct((Bp, SODIM), jnp.float32),
                   jax.ShapeDtypeStruct((Bp, 128), jnp.float32)),
        grid_spec=pltpu.PrefetchScalarGridSpec(
            num_scalar_prefetch=0,
            grid=(Bp // bm, T // tt),
            in_specs=[x_spec, x_spec] + w_specs + [b_spec],
            out_specs=[emb_spec, cos_spec],
            scratch_shapes=[pltpu.VMEM((bm, D), jnp.float32),   # sum of noise feats
                            pltpu.VMEM((bm, D), jnp.float32)],  # sum of raw feats
        ),
        compiler_params=pltpu.CompilerParams(
            dimension_semantics=("parallel", "arbitrary"),
            vmem_limit_bytes=48 * 1024 * 1024),
    )(x, eps_p, *weights, biases)

    text_mask = jnp.ones((B, 1, 1), jnp.float32)
    return emb[:B], text_mask, cos[:B, 0]


# ---------------------------------------------------------------------------
# pure-JAX reference (same math, f32) for a tolerance check
# ---------------------------------------------------------------------------
def _mlp_ref(x, p):
    w1, b1, w2, b2, w3, b3, w4, b4 = p
    h = jnp.maximum(x @ w1 + b1, 0.0)
    h = jnp.maximum(h @ w2 + b2, 0.0)
    h = jnp.maximum(h @ w3 + b3, 0.0)
    return jnp.maximum(h @ w4 + b4, 0.0)


def reference_forward(x, eps, mlp1_p, mlp2_p, sen_fc_p):
    l2 = lambda v: v / jnp.linalg.norm(v, axis=-1, keepdims=True)
    var = _mlp_ref(x, mlp1_p)
    mu = _mlp_ref(x, mlp2_p)
    noise = eps * jnp.exp(0.5 * var) + mu
    x_n = l2(x)
    noise_out = l2((1.0 - NOISE_LEVEL) * x_n + NOISE_LEVEL * l2(noise))
    sel = l2(jnp.mean(noise_out, axis=1))     # selector approximated by mean pooling
    summ = l2(jnp.mean(x, axis=1))
    cos = jnp.sum(sel * summ, axis=-1)
    fw1, fb1, fw2, fb2 = sen_fc_p
    h = jnp.maximum(sel @ fw1 + fb1, 0.0)
    emb = jnp.maximum(h @ fw2 + fb2, 0.0)
    return emb, cos


# ---------------------------------------------------------------------------
# deterministic parameter construction (torch.nn.Linear-style uniform init)
# ---------------------------------------------------------------------------
def _linear_params(key, fan_in, fan_out):
    kw, kb = jax.random.split(key)
    bound = 1.0 / jnp.sqrt(fan_in)
    w = jax.random.uniform(kw, (fan_in, fan_out), jnp.float32, -bound, bound)
    b = jax.random.uniform(kb, (1, fan_out), jnp.float32, -bound, bound)
    return w, b


def make_mlp_params(key):
    k1, k2, k3, k4 = jax.random.split(key, 4)
    w1, b1 = _linear_params(k1, SDIM, H1)
    w2, b2 = _linear_params(k2, H1, H2)
    w3, b3 = _linear_params(k3, H2, H1)
    w4, b4 = _linear_params(k4, H1, SDIM)
    return (w1, b1, w2, b2, w3, b3, w4, b4)


def make_sen_fc_params(key):
    k1, k2 = jax.random.split(key)
    w1, b1 = _linear_params(k1, SDIM, 2 * SDIM)
    w2, b2 = _linear_params(k2, 2 * SDIM, SODIM)
    return (w1, b1, w2, b2)


if __name__ == "__main__":
    key = jax.random.PRNGKey(0)
    k_x, k_eps, k_m1, k_m2, k_fc = jax.random.split(key, 5)

    B, T, D = 2, 8, SDIM
    clip_vid_feats = jax.random.normal(k_x, (B, T, D), jnp.float32)
    eps = jax.random.normal(k_eps, (B, T, D), jnp.float32)   # torch.normal equivalent

    mlp1_p = make_mlp_params(k_m1)
    mlp2_p = make_mlp_params(k_m2)
    sen_fc_p = make_sen_fc_params(k_fc)

    pseudo_sen_emb, text_mask, cos_sim = language_free_forward(
        clip_vid_feats, eps, mlp1_p, mlp2_p, sen_fc_p)
    jax.block_until_ready((pseudo_sen_emb, text_mask, cos_sim))

    assert pseudo_sen_emb.shape == (B, SODIM)
    assert text_mask.shape == (B, 1, 1)
    assert cos_sim.shape == (B,)
    assert bool(jnp.all(jnp.isfinite(pseudo_sen_emb)))
    assert bool(jnp.all(jnp.isfinite(cos_sim)))
    assert bool(jnp.all(jnp.abs(cos_sim) <= 1.0 + 1e-3))

    emb_ref, cos_ref_v = reference_forward(clip_vid_feats, eps, mlp1_p, mlp2_p, sen_fc_p)
    emb_err = float(jnp.max(jnp.abs(pseudo_sen_emb - emb_ref)))
    cos_err = float(jnp.max(jnp.abs(cos_sim - cos_ref_v)))
    assert emb_err < 0.15, f"emb mismatch vs reference: {emb_err}"
    assert cos_err < 0.05, f"cos mismatch vs reference: {cos_err}"

    print("KERNEL_OK")
</pallas_src>

<mosaic_0001>
module attributes {stable_mosaic.version = 11 : i64} {
  func.func @lgi_fused_kernel(%arg0: i32, %arg1: i32, %arg2: memref<8x8x128xf32, #tpu.memory_space<vmem>>, %arg3: memref<8x8x128xf32, #tpu.memory_space<vmem>>, %arg4: memref<128x512xbf16, #tpu.memory_space<vmem>>, %arg5: memref<256x128xbf16, #tpu.memory_space<vmem>>, %arg6: memref<128x256xbf16, #tpu.memory_space<vmem>>, %arg7: memref<256x128xbf16, #tpu.memory_space<vmem>>, %arg8: memref<256x128xbf16, #tpu.memory_space<vmem>>, %arg9: memref<128x256xbf16, #tpu.memory_space<vmem>>, %arg10: memref<256x128xbf16, #tpu.memory_space<vmem>>, %arg11: memref<128x256xbf16, #tpu.memory_space<vmem>>, %arg12: memref<256x128xbf16, #tpu.memory_space<vmem>>, %arg13: memref<1x1920xf32, #tpu.memory_space<vmem>>, %arg14: memref<8x128xf32, #tpu.memory_space<vmem>>, %arg15: memref<8x128xf32, #tpu.memory_space<vmem>>, %arg16: memref<8x128xf32, #tpu.memory_space<vmem>>, %arg17: memref<8x128xf32, #tpu.memory_space<vmem>>) attributes {dimension_semantics = [#tpu.dimension_semantics<parallel>, #tpu.dimension_semantics<arbitrary>], iteration_bounds = array<i64: 1, 1>, scalar_prefetch = 0 : i64, scratch_operands = 2 : i64, tpu.core_type = #tpu.core_type<tc>, window_params = [{transform_indices = @transform_0, window_bounds = array<i64: 8, 8, 128>}, {transform_indices = @transform_1, window_bounds = array<i64: 8, 8, 128>}, {pipeline_mode = #tpu.pipeline_mode<synchronous>, transform_indices = @transform_2, window_bounds = array<i64: 128, 512>}, {pipeline_mode = #tpu.pipeline_mode<synchronous>, transform_indices = @transform_3, window_bounds = array<i64: 256, 128>}, {pipeline_mode = #tpu.pipeline_mode<synchronous>, transform_indices = @transform_4, window_bounds = array<i64: 128, 256>}, {pipeline_mode = #tpu.pipeline_mode<synchronous>, transform_indices = @transform_5, window_bounds = array<i64: 256, 128>}, {pipeline_mode = #tpu.pipeline_mode<synchronous>, transform_indices = @transform_6, window_bounds = array<i64: 256, 128>}, {pipeline_mode = #tpu.pipeline_mode<synchronous>, transform_indices = @transform_7, window_bounds = array<i64: 128, 256>}, {pipeline_mode = #tpu.pipeline_mode<synchronous>, transform_indices = @transform_8, window_bounds = array<i64: 256, 128>}, {pipeline_mode = #tpu.pipeline_mode<synchronous>, transform_indices = @transform_9, window_bounds = array<i64: 128, 256>}, {pipeline_mode = #tpu.pipeline_mode<synchronous>, transform_indices = @transform_10, window_bounds = array<i64: 256, 128>}, {pipeline_mode = #tpu.pipeline_mode<synchronous>, transform_indices = @transform_11, window_bounds = array<i64: 1, 1920>}, {transform_indices = @transform_12, window_bounds = array<i64: 8, 128>}, {transform_indices = @transform_13, window_bounds = array<i64: 8, 128>}]} {
    %c0_i32 = arith.constant 0 : i32
    %0 = arith.cmpi eq, %arg1, %c0_i32 : i32
    %1 = arith.extui %0 : i1 to i32
    %c0_i32_0 = arith.constant 0 : i32
    %2 = arith.cmpi ne, %1, %c0_i32_0 : i32
    scf.if %2 {
      %cst_59 = arith.constant 0.000000e+00 : f32
      %104 = vector.broadcast %cst_59 : f32 to vector<8x128xf32>
      %c0_60 = arith.constant 0 : index
      %c0_61 = arith.constant 0 : index
      %105 = vector.load %arg16[%c0_60, %c0_61] : memref<8x128xf32, #tpu.memory_space<vmem>>, vector<8x128xf32>
      tpu.vector_store %arg16[%c0_60, %c0_61], %104 {strides = array<i32>} : memref<8x128xf32, #tpu.memory_space<vmem>>, vector<8x128xf32>,
      %cst_62 = arith.constant 0.000000e+00 : f32
      %106 = vector.broadcast %cst_62 : f32 to vector<8x128xf32>
      %c0_63 = arith.constant 0 : index
      %c0_64 = arith.constant 0 : index
      %107 = vector.load %arg17[%c0_63, %c0_64] : memref<8x128xf32, #tpu.memory_space<vmem>>, vector<8x128xf32>
      tpu.vector_store %arg17[%c0_63, %c0_64], %106 {strides = array<i32>} : memref<8x128xf32, #tpu.memory_space<vmem>>, vector<8x128xf32>,
    } else {
    }
    %c0 = arith.constant 0 : index
    %c0_1 = arith.constant 0 : index
    %c0_2 = arith.constant 0 : index
    %3 = vector.load %arg2[%c0, %c0_1, %c0_2] : memref<8x8x128xf32, #tpu.memory_space<vmem>>, vector<8x8x128xf32>
    %4 = vector.shape_cast %3 : vector<8x8x128xf32> to vector<64x128xf32>
    %c0_3 = arith.constant 0 : index
    %c0_4 = arith.constant 0 : index
    %c0_5 = arith.constant 0 : index
    %5 = vector.load %arg3[%c0_3, %c0_4, %c0_5] : memref<8x8x128xf32, #tpu.memory_space<vmem>>, vector<8x8x128xf32>
    %6 = vector.shape_cast %5 : vector<8x8x128xf32> to vector<64x128xf32>
    %7 = arith.truncf %4 : vector<64x128xf32> to vector<64x128xbf16>
    %c0_6 = arith.constant 0 : index
    %c0_7 = arith.constant 0 : index
    %8 = vector.load %arg13[%c0_6, %c0_7] : memref<1x1920xf32, #tpu.memory_space<vmem>>, vector<1x512xf32>
    %c0_8 = arith.constant 0 : index
    %c0_9 = arith.constant 0 : index
    %9 = vector.load %arg4[%c0_8, %c0_9] : memref<128x512xbf16, #tpu.memory_space<vmem>>, vector<128x512xbf16>
    %cst = arith.constant dense<0.000000e+00> : vector<64x512xf32>
    %10 = tpu.matmul %7, %9, %cst {dimension_numbers = #tpu.dot_dimension_numbers<[1], [0], [0], [1], [0, 0, 1, 1], [], []>} : vector<64x128xbf16>, vector<128x512xbf16>, vector<64x512xf32> -> vector<64x512xf32>
    %11 = vector.broadcast %8 : vector<1x512xf32> to vector<64x512xf32>
    %12 = arith.addf %10, %11 : vector<64x512xf32>
    %cst_10 = arith.constant 0.000000e+00 : f32
    %13 = vector.broadcast %cst_10 : f32 to vector<64x512xf32>
    %14 = arith.maximumf %12, %13 : vector<64x512xf32>
    %15 = arith.truncf %14 : vector<64x512xf32> to vector<64x512xbf16>
    %16 = vector.extract_strided_slice %15 {offsets = [0, 0], sizes = [64, 256], strides = [1, 1]} : vector<64x512xbf16> to vector<64x256xbf16>
    %17 = vector.extract_strided_slice %15 {offsets = [0, 256], sizes = [64, 256], strides = [1, 1]} : vector<64x512xbf16> to vector<64x256xbf16>
    %c0_11 = arith.constant 0 : index
    %c512 = arith.constant 512 : index
    %18 = vector.load %arg13[%c0_11, %c512] : memref<1x1920xf32, #tpu.memory_space<vmem>>, vector<1x128xf32>
    %c0_12 = arith.constant 0 : index
    %c0_13 = arith.constant 0 : index
    %19 = vector.load %arg5[%c0_12, %c0_13] : memref<256x128xbf16, #tpu.memory_space<vmem>>, vector<256x128xbf16>
    %cst_14 = arith.constant dense<0.000000e+00> : vector<64x128xf32>
    %20 = tpu.matmul %16, %19, %cst_14 {dimension_numbers = #tpu.dot_dimension_numbers<[1], [0], [0], [1], [0, 0, 1, 1], [], []>} : vector<64x256xbf16>, vector<256x128xbf16>, vector<64x128xf32> -> vector<64x128xf32>
    %21 = vector.broadcast %18 : vector<1x128xf32> to vector<64x128xf32>
    %22 = arith.addf %20, %21 : vector<64x128xf32>
    %cst_15 = arith.constant 0.000000e+00 : f32
    %23 = vector.broadcast %cst_15 : f32 to vector<64x128xf32>
    %24 = arith.maximumf %22, %23 : vector<64x128xf32>
    %25 = arith.truncf %24 : vector<64x128xf32> to vector<64x128xbf16>
    %c0_16 = arith.constant 0 : index
    %c640 = arith.constant 640 : index
    %26 = vector.load %arg13[%c0_16, %c640] : memref<1x1920xf32, #tpu.memory_space<vmem>>, vector<1x256xf32>
    %c0_17 = arith.constant 0 : index
    %c0_18 = arith.constant 0 : index
    %27 = vector.load %arg6[%c0_17, %c0_18] : memref<128x256xbf16, #tpu.memory_space<vmem>>, vector<128x256xbf16>
    %cst_19 = arith.constant dense<0.000000e+00> : vector<64x256xf32>
    %28 = tpu.matmul %25, %27, %cst_19 {dimension_numbers = #tpu.dot_dimension_numbers<[1], [0], [0], [1], [0, 0, 1, 1], [], []>} : vector<64x128xbf16>, vector<128x256xbf16>, vector<64x256xf32> -> vector<64x256xf32>
    %29 = vector.broadcast %26 : vector<1x256xf32> to vector<64x256xf32>
    %30 = arith.addf %28, %29 : vector<64x256xf32>
    %cst_20 = arith.constant 0.000000e+00 : f32
    %31 = vector.broadcast %cst_20 : f32 to vector<64x256xf32>
    %32 = arith.maximumf %30, %31 : vector<64x256xf32>
    %33 = arith.truncf %32 : vector<64x256xf32> to vector<64x256xbf16>
    %c0_21 = arith.constant 0 : index
    %c896 = arith.constant 896 : index
    %34 = vector.load %arg13[%c0_21, %c896] : memref<1x1920xf32, #tpu.memory_space<vmem>>, vector<1x128xf32>
    %c0_22 = arith.constant 0 : index
    %c0_23 = arith.constant 0 : index
    %35 = vector.load %arg7[%c0_22, %c0_23] : memref<256x128xbf16, #tpu.memory_space<vmem>>, vector<256x128xbf16>
    %cst_24 = arith.constant dense<0.000000e+00> : vector<64x128xf32>
    %36 = tpu.matmul %33, %35, %cst_24 {dimension_numbers = #tpu.dot_dimension_numbers<[1], [0], [0], [1], [0, 0, 1, 1], [], []>} : vector<64x256xbf16>, vector<256x128xbf16>, vector<64x128xf32> -> vector<64x128xf32>
    %37 = vector.broadcast %34 : vector<1x128xf32> to vector<64x128xf32>
    %38 = arith.addf %36, %37 : vector<64x128xf32>
    %cst_25 = arith.constant 0.000000e+00 : f32
    %39 = vector.broadcast %cst_25 : f32 to vector<64x128xf32>
    %40 = arith.maximumf %38, %39 : vector<64x128xf32>
    %c0_26 = arith.constant 0 : index
    %c1024 = arith.constant 1024 : index
    %41 = vector.load %arg13[%c0_26, %c1024] : memref<1x1920xf32, #tpu.memory_space<vmem>>, vector<1x128xf32>
    %c0_27 = arith.constant 0 : index
    %c0_28 = arith.constant 0 : index
    %42 = vector.load %arg8[%c0_27, %c0_28] : memref<256x128xbf16, #tpu.memory_space<vmem>>, vector<256x128xbf16>
    %cst_29 = arith.constant dense<0.000000e+00> : vector<64x128xf32>
    %43 = tpu.matmul %17, %42, %cst_29 {dimension_numbers = #tpu.dot_dimension_numbers<[1], [0], [0], [1], [0, 0, 1, 1], [], []>} : vector<64x256xbf16>, vector<256x128xbf16>, vector<64x128xf32> -> vector<64x128xf32>
    %44 = vector.broadcast %41 : vector<1x128xf32> to vector<64x128xf32>
    %45 = arith.addf %43, %44 : vector<64x128xf32>
    %cst_30 = arith.constant 0.000000e+00 : f32
    %46 = vector.broadcast %cst_30 : f32 to vector<64x128xf32>
    %47 = arith.maximumf %45, %46 : vector<64x128xf32>
    %48 = arith.truncf %47 : vector<64x128xf32> to vector<64x128xbf16>
    %c0_31 = arith.constant 0 : index
    %c1152 = arith.constant 1152 : index
    %49 = vector.load %arg13[%c0_31, %c1152] : memref<1x1920xf32, #tpu.memory_space<vmem>>, vector<1x256xf32>
    %c0_32 = arith.constant 0 : index
    %c0_33 = arith.constant 0 : index
    %50 = vector.load %arg9[%c0_32, %c0_33] : memref<128x256xbf16, #tpu.memory_space<vmem>>, vector<128x256xbf16>
    %cst_34 = arith.constant dense<0.000000e+00> : vector<64x256xf32>
    %51 = tpu.matmul %48, %50, %cst_34 {dimension_numbers = #tpu.dot_dimension_numbers<[1], [0], [0], [1], [0, 0, 1, 1], [], []>} : vector<64x128xbf16>, vector<128x256xbf16>, vector<64x256xf32> -> vector<64x256xf32>
    %52 = vector.broadcast %49 : vector<1x256xf32> to vector<64x256xf32>
    %53 = arith.addf %51, %52 : vector<64x256xf32>
    %cst_35 = arith.constant 0.000000e+00 : f32
    %54 = vector.broadcast %cst_35 : f32 to vector<64x256xf32>
    %55 = arith.maximumf %53, %54 : vector<64x256xf32>
    %56 = arith.truncf %55 : vector<64x256xf32> to vector<64x256xbf16>
    %c0_36 = arith.constant 0 : index
    %c1408 = arith.constant 1408 : index
    %57 = vector.load %arg13[%c0_36, %c1408] : memref<1x1920xf32, #tpu.memory_space<vmem>>, vector<1x128xf32>
    %c0_37 = arith.constant 0 : index
    %c0_38 = arith.constant 0 : index
    %58 = vector.load %arg10[%c0_37, %c0_38] : memref<256x128xbf16, #tpu.memory_space<vmem>>, vector<256x128xbf16>
    %cst_39 = arith.constant dense<0.000000e+00> : vector<64x128xf32>
    %59 = tpu.matmul %56, %58, %cst_39 {dimension_numbers = #tpu.dot_dimension_numbers<[1], [0], [0], [1], [0, 0, 1, 1], [], []>} : vector<64x256xbf16>, vector<256x128xbf16>, vector<64x128xf32> -> vector<64x128xf32>
    %60 = vector.broadcast %57 : vector<1x128xf32> to vector<64x128xf32>
    %61 = arith.addf %59, %60 : vector<64x128xf32>
    %cst_40 = arith.constant 0.000000e+00 : f32
    %62 = vector.broadcast %cst_40 : f32 to vector<64x128xf32>
    %63 = arith.maximumf %61, %62 : vector<64x128xf32>
    %cst_41 = arith.constant 5.000000e-01 : f32
    %64 = vector.broadcast %cst_41 : f32 to vector<64x128xf32>
    %65 = arith.mulf %64, %40 : vector<64x128xf32>
    %66 = math.exp %65 : vector<64x128xf32>
    %67 = arith.mulf %6, %66 : vector<64x128xf32>
    %68 = arith.addf %67, %63 : vector<64x128xf32>
    %69 = arith.mulf %4, %4 : vector<64x128xf32>
    %cst_42 = arith.constant dense<0.000000e+00> : vector<64xf32>
    %70 = vector.multi_reduction <add>, %69, %cst_42 [1] : vector<64x128xf32> to vector<64xf32>
    %71 = vector.shape_cast %70 : vector<64xf32> to vector<64x1xf32>
    %72 = math.rsqrt %71 : vector<64x1xf32>
    %73 = vector.broadcast %72 : vector<64x1xf32> to vector<64x128xf32>
    %74 = arith.mulf %4, %73 : vector<64x128xf32>
    %cst_43 = arith.constant 0.959999978 : f32
    %75 = vector.broadcast %cst_43 : f32 to vector<64x128xf32>
    %76 = arith.mulf %75, %74 : vector<64x128xf32>
    %77 = arith.mulf %68, %68 : vector<64x128xf32>
    %cst_44 = arith.constant dense<0.000000e+00> : vector<64xf32>
    %78 = vector.multi_reduction <add>, %77, %cst_44 [1] : vector<64x128xf32> to vector<64xf32>
    %79 = vector.shape_cast %78 : vector<64xf32> to vector<64x1xf32>
    %80 = math.rsqrt %79 : vector<64x1xf32>
    %81 = vector.broadcast %80 : vector<64x1xf32> to vector<64x128xf32>
    %82 = arith.mulf %68, %81 : vector<64x128xf32>
    %cst_45 = arith.constant 4.000000e-02 : f32
    %83 = vector.broadcast %cst_45 : f32 to vector<64x128xf32>
    %84 = arith.mulf %83, %82 : vector<64x128xf32>
    %85 = arith.addf %76, %84 : vector<64x128xf32>
    %86 = arith.mulf %85, %85 : vector<64x128xf32>
    %cst_46 = arith.constant dense<0.000000e+00> : vector<64xf32>
    %87 = vector.multi_reduction <add>, %86, %cst_46 [1] : vector<64x128xf32> to vector<64xf32>
    %88 = vector.shape_cast %87 : vector<64xf32> to vector<64x1xf32>
    %89 = math.rsqrt %88 : vector<64x1xf32>
    %90 = vector.broadcast %89 : vector<64x1xf32> to vector<64x128xf32>
    %91 = arith.mulf %85, %90 : vector<64x128xf32>
    %c0_47 = arith.constant 0 : index
    %c0_48 = arith.constant 0 : index
    %92 = vector.load %arg16[%c0_47, %c0_48] : memref<8x128xf32, #tpu.memory_space<vmem>>, vector<8x128xf32>
    %93 = vector.shape_cast %91 : vector<64x128xf32> to vector<8x8x128xf32>
    %cst_49 = arith.constant dense<0.000000e+00> : vector<8x128xf32>
    %94 = vector.multi_reduction <add>, %93, %cst_49 [1] : vector<8x8x128xf32> to vector<8x128xf32>
    %95 = arith.addf %92, %94 : vector<8x128xf32>
    %c0_50 = arith.constant 0 : index
    %c0_51 = arith.constant 0 : index
    %96 = vector.load %arg16[%c0_50, %c0_51] : memref<8x128xf32, #tpu.memory_space<vmem>>, vector<8x128xf32>
    tpu.vector_store %arg16[%c0_50, %c0_51], %95 {strides = array<i32>} : memref<8x128xf32, #tpu.memory_space<vmem>>, vector<8x128xf32>,
    %c0_52 = arith.constant 0 : index
    %c0_53 = arith.constant 0 : index
    %97 = vector.load %arg17[%c0_52, %c0_53] : memref<8x128xf32, #tpu.memory_space<vmem>>, vector<8x128xf32>
    %cst_54 = arith.constant dense<0.000000e+00> : vector<8x128xf32>
    %98 = vector.multi_reduction <add>, %3, %cst_54 [1] : vector<8x8x128xf32> to vector<8x128xf32>
    %99 = arith.addf %97, %98 : vector<8x128xf32>
    %c0_55 = arith.constant 0 : index
    %c0_56 = arith.constant 0 : index
    %100 = vector.load %arg17[%c0_55, %c0_56] : memref<8x128xf32, #tpu.memory_space<vmem>>, vector<8x128xf32>
    tpu.vector_store %arg17[%c0_55, %c0_56], %99 {strides = array<i32>} : memref<8x128xf32, #tpu.memory_space<vmem>>, vector<8x128xf32>,
    %c0_i32_57 = arith.constant 0 : i32
    %101 = arith.cmpi eq, %arg1, %c0_i32_57 : i32
    %102 = arith.extui %101 : i1 to i32
    %c0_i32_58 = arith.constant 0 : i32
    %103 = arith.cmpi ne, %102, %c0_i32_58 : i32
    scf.if %103 {
      %c0_59 = arith.constant 0 : index
      %c0_60 = arith.constant 0 : index
      %104 = vector.load %arg16[%c0_59, %c0_60] : memref<8x128xf32, #tpu.memory_space<vmem>>, vector<8x128xf32>
      %105 = arith.mulf %104, %104 : vector<8x128xf32>
      %cst_61 = arith.constant dense<0.000000e+00> : vector<8xf32>
      %106 = vector.multi_reduction <add>, %105, %cst_61 [1] : vector<8x128xf32> to vector<8xf32>
      %107 = vector.shape_cast %106 : vector<8xf32> to vector<8x1xf32>
      %108 = math.rsqrt %107 : vector<8x1xf32>
      %109 = vector.broadcast %108 : vector<8x1xf32> to vector<8x128xf32>
      %110 = arith.mulf %104, %109 : vector<8x128xf32>
      %c0_62 = arith.constant 0 : index
      %c0_63 = arith.constant 0 : index
      %111 = vector.load %arg17[%c0_62, %c0_63] : memref<8x128xf32, #tpu.memory_space<vmem>>, vector<8x128xf32>
      %112 = arith.mulf %111, %111 : vector<8x128xf32>
      %cst_64 = arith.constant dense<0.000000e+00> : vector<8xf32>
      %113 = vector.multi_reduction <add>, %112, %cst_64 [1] : vector<8x128xf32> to vector<8xf32>
      %114 = vector.shape_cast %113 : vector<8xf32> to vector<8x1xf32>
      %115 = math.rsqrt %114 : vector<8x1xf32>
      %116 = vector.broadcast %115 : vector<8x1xf32> to vector<8x128xf32>
      %117 = arith.mulf %111, %116 : vector<8x128xf32>
      %118 = arith.mulf %117, %110 : vector<8x128xf32>
      %cst_65 = arith.constant dense<0.000000e+00> : vector<8xf32>
      %119 = vector.multi_reduction <add>, %118, %cst_65 [1] : vector<8x128xf32> to vector<8xf32>
      %120 = vector.shape_cast %119 : vector<8xf32> to vector<8x1xf32>
      %121 = vector.shape_cast %120 : vector<8x1xf32> to vector<8x1xf32>
      %122 = vector.broadcast %121 : vector<8x1xf32> to vector<8x128xf32>
      %c0_66 = arith.constant 0 : index
      %c0_67 = arith.constant 0 : index
      %123 = vector.load %arg15[%c0_66, %c0_67] : memref<8x128xf32, #tpu.memory_space<vmem>>, vector<8x128xf32>
      tpu.vector_store %arg15[%c0_66, %c0_67], %122 {strides = array<i32>} : memref<8x128xf32, #tpu.memory_space<vmem>>, vector<8x128xf32>,
      %124 = arith.truncf %110 : vector<8x128xf32> to vector<8x128xbf16>
      %c0_68 = arith.constant 0 : index
      %c1536 = arith.constant 1536 : index
      %125 = vector.load %arg13[%c0_68, %c1536] : memref<1x1920xf32, #tpu.memory_space<vmem>>, vector<1x256xf32>
      %c0_69 = arith.constant 0 : index
      %c0_70 = arith.constant 0 : index
      %126 = vector.load %arg11[%c0_69, %c0_70] : memref<128x256xbf16, #tpu.memory_space<vmem>>, vector<128x256xbf16>
      %cst_71 = arith.constant dense<0.000000e+00> : vector<8x256xf32>
      %127 = tpu.matmul %124, %126, %cst_71 {dimension_numbers = #tpu.dot_dimension_numbers<[1], [0], [0], [1], [0, 0, 1, 1], [], []>} : vector<8x128xbf16>, vector<128x256xbf16>, vector<8x256xf32> -> vector<8x256xf32>
      %128 = vector.broadcast %125 : vector<1x256xf32> to vector<8x256xf32>
      %129 = arith.addf %127, %128 : vector<8x256xf32>
      %cst_72 = arith.constant 0.000000e+00 : f32
      %130 = vector.broadcast %cst_72 : f32 to vector<8x256xf32>
      %131 = arith.maximumf %129, %130 : vector<8x256xf32>
      %132 = arith.truncf %131 : vector<8x256xf32> to vector<8x256xbf16>
      %c0_73 = arith.constant 0 : index
      %c1792 = arith.constant 1792 : index
      %133 = vector.load %arg13[%c0_73, %c1792] : memref<1x1920xf32, #tpu.memory_space<vmem>>, vector<1x128xf32>
      %c0_74 = arith.constant 0 : index
      %c0_75 = arith.constant 0 : index
      %134 = vector.load %arg12[%c0_74, %c0_75] : memref<256x128xbf16, #tpu.memory_space<vmem>>, vector<256x128xbf16>
      %cst_76 = arith.constant dense<0.000000e+00> : vector<8x128xf32>
      %135 = tpu.matmul %132, %134, %cst_76 {dimension_numbers = #tpu.dot_dimension_numbers<[1], [0], [0], [1], [0, 0, 1, 1], [], []>} : vector<8x256xbf16>, vector<256x128xbf16>, vector<8x128xf32> -> vector<8x128xf32>
      %136 = vector.broadcast %133 : vector<1x128xf32> to vector<8x128xf32>
      %137 = arith.addf %135, %136 : vector<8x128xf32>
      %cst_77 = arith.constant 0.000000e+00 : f32
      %138 = vector.broadcast %cst_77 : f32 to vector<8x128xf32>
      %139 = arith.maximumf %137, %138 : vector<8x128xf32>
      %c0_78 = arith.constant 0 : index
      %c0_79 = arith.constant 0 : index
      %140 = vector.load %arg14[%c0_78, %c0_79] : memref<8x128xf32, #tpu.memory_space<vmem>>, vector<8x128xf32>
      tpu.vector_store %arg14[%c0_78, %c0_79], %139 {strides = array<i32>} : memref<8x128xf32, #tpu.memory_space<vmem>>, vector<8x128xf32>,
    } else {
    }
    return
  }
  func.func @transform_0(%arg0: i32, %arg1: i32) -> (i32, i32, i32) {
    %c0_i32 = arith.constant 0 : i32
    %c0_i32_0 = arith.constant 0 : i32
    return %arg0, %arg1, %c0_i32 : i32, i32, i32
  }
  func.func @transform_1(%arg0: i32, %arg1: i32) -> (i32, i32, i32) {
    %c0_i32 = arith.constant 0 : i32
    %c0_i32_0 = arith.constant 0 : i32
    return %arg0, %arg1, %c0_i32 : i32, i32, i32
  }
  func.func @transform_2(%arg0: i32, %arg1: i32) -> (i32, i32) {
    %c0_i32 = arith.constant 0 : i32
    %c0_i32_0 = arith.constant 0 : i32
    %c0_i32_1 = arith.constant 0 : i32
    return %c0_i32, %c0_i32_0 : i32, i32
  }
  func.func @transform_3(%arg0: i32, %arg1: i32) -> (i32, i32) {
    %c0_i32 = arith.constant 0 : i32
    %c0_i32_0 = arith.constant 0 : i32
    %c0_i32_1 = arith.constant 0 : i32
    return %c0_i32, %c0_i32_0 : i32, i32
  }
  func.func @transform_4(%arg0: i32, %arg1: i32) -> (i32, i32) {
    %c0_i32 = arith.constant 0 : i32
    %c0_i32_0 = arith.constant 0 : i32
    %c0_i32_1 = arith.constant 0 : i32
    return %c0_i32, %c0_i32_0 : i32, i32
  }
  func.func @transform_5(%arg0: i32, %arg1: i32) -> (i32, i32) {
    %c0_i32 = arith.constant 0 : i32
    %c0_i32_0 = arith.constant 0 : i32
    %c0_i32_1 = arith.constant 0 : i32
    return %c0_i32, %c0_i32_0 : i32, i32
  }
  func.func @transform_6(%arg0: i32, %arg1: i32) -> (i32, i32) {
    %c0_i32 = arith.constant 0 : i32
    %c0_i32_0 = arith.constant 0 : i32
    %c0_i32_1 = arith.constant 0 : i32
    return %c0_i32, %c0_i32_0 : i32, i32
  }
  func.func @transform_7(%arg0: i32, %arg1: i32) -> (i32, i32) {
    %c0_i32 = arith.constant 0 : i32
    %c0_i32_0 = arith.constant 0 : i32
    %c0_i32_1 = arith.constant 0 : i32
    return %c0_i32, %c0_i32_0 : i32, i32
  }
  func.func @transform_8(%arg0: i32, %arg1: i32) -> (i32, i32) {
    %c0_i32 = arith.constant 0 : i32
    %c0_i32_0 = arith.constant 0 : i32
    %c0_i32_1 = arith.constant 0 : i32
    return %c0_i32, %c0_i32_0 : i32, i32
  }
  func.func @transform_9(%arg0: i32, %arg1: i32) -> (i32, i32) {
    %c0_i32 = arith.constant 0 : i32
    %c0_i32_0 = arith.constant 0 : i32
    %c0_i32_1 = arith.constant 0 : i32
    return %c0_i32, %c0_i32_0 : i32, i32
  }
  func.func @transform_10(%arg0: i32, %arg1: i32) -> (i32, i32) {
    %c0_i32 = arith.constant 0 : i32
    %c0_i32_0 = arith.constant 0 : i32
    %c0_i32_1 = arith.constant 0 : i32
    return %c0_i32, %c0_i32_0 : i32, i32
  }
  func.func @transform_11(%arg0: i32, %arg1: i32) -> (i32, i32) {
    %c0_i32 = arith.constant 0 : i32
    %c0_i32_0 = arith.constant 0 : i32
    %c0_i32_1 = arith.constant 0 : i32
    return %c0_i32, %c0_i32_0 : i32, i32
  }
  func.func @transform_12(%arg0: i32, %arg1: i32) -> (i32, i32) {
    %c0_i32 = arith.constant 0 : i32
    %c0_i32_0 = arith.constant 0 : i32
    return %arg0, %c0_i32 : i32, i32
  }
  func.func @transform_13(%arg0: i32, %arg1: i32) -> (i32, i32) {
    %c0_i32 = arith.constant 0 : i32
    %c0_i32_0 = arith.constant 0 : i32
    return %arg0, %c0_i32 : i32, i32
  }
}

</mosaic_0001>

<llo_original>
// kernel: tpu_custom_call.1
$region0: #{tpu_custom_call.1}
  #allocation0 [shape = 'u32[]', space=smem, size = 0x4, offset = 0x4, fixed_abs, tag = 'smem constant byte address 0x4 - core index']
  #allocation1 [shape = 'u32[144,128]{1,0:T(1,128)}', space=vmem, size = 0x12000, scoped, tag = 'internal scratch']
  #allocation2 [shape = 'f32[8,128]{1,0:T(8,128)}', space=vmem, size = 0x1000, scoped, tag = 'scratch operand']
  #allocation3 [shape = 'f32[8,128]{1,0:T(8,128)}', space=vmem, size = 0x1000, scoped, tag = 'scratch operand']
  %s0 = inlined_call_operand.hbm [shape: f32[8,8,128], index: 0, kind: input, shape index: {}]
  %s1 = inlined_call_operand.hbm [shape: f32[8,8,128], index: 1, kind: input, shape index: {}]
  %s2 = inlined_call_operand.hbm [shape: bf16[128,512], index: 2, kind: input, shape index: {}]
  %s3 = inlined_call_operand.hbm [shape: bf16[256,128], index: 3, kind: input, shape index: {}]
  %s4 = inlined_call_operand.hbm [shape: bf16[128,256], index: 4, kind: input, shape index: {}]
  %s5 = inlined_call_operand.hbm [shape: bf16[256,128], index: 5, kind: input, shape index: {}]
  %s6 = inlined_call_operand.hbm [shape: bf16[256,128], index: 6, kind: input, shape index: {}]
  %s7 = inlined_call_operand.hbm [shape: bf16[128,256], index: 7, kind: input, shape index: {}]
  %s8 = inlined_call_operand.hbm [shape: bf16[256,128], index: 8, kind: input, shape index: {}]
  %s9 = inlined_call_operand.hbm [shape: bf16[128,256], index: 9, kind: input, shape index: {}]
  %s10 = inlined_call_operand.hbm [shape: bf16[256,128], index: 10, kind: input, shape index: {}]
  %s11 = inlined_call_operand.vmem [shape: f32[1,1920], index: 11, kind: input, shape index: {}]
  %s12 = inlined_call_operand.hbm [shape: f32[8,128], index: 12, kind: output, shape index: {0}]
  %s13 = inlined_call_operand.hbm [shape: f32[8,128], index: 13, kind: output, shape index: {1}]
  %14 = xla_tuple %s12, %s13
  %s15 = sld [smem:[#allocation0]]
  $region118: #{tpu_custom_call.1} parent=0
    _
  %s17 = ssub.s32 1, %s15
  %s18 = scalar_select 0, %s17, %s15
  $region1: #{tpu_custom_call.1} parent=0
    #allocation4 [shape = 'u8[32768]{0}', space=vmem, size = 0x8000, scoped, tag = 'input window, operand 0, single buffered']
    #allocation5 [shape = 's32[1]{0}', space=sflag, size = 0x4, scoped, tag = 'scoped memory for tpu_custom_call.1']
    #allocation6 [shape = 's32[1]{0}', space=sflag, size = 0x4, scoped, tag = 'scoped memory for tpu_custom_call.1']
    #allocation7 [shape = 'u8[32768]{0}', space=vmem, size = 0x8000, scoped, tag = 'input window, operand 1, single buffered']
    #allocation8 [shape = 's32[1]{0}', space=sflag, size = 0x4, scoped, tag = 'scoped memory for tpu_custom_call.1']
    #allocation9 [shape = 'u8[131072]{0}', space=vmem, size = 0x20000, scoped, tag = 'input window, operand 2, single buffered']
    #allocation10 [shape = 'u8[65536]{0}', space=vmem, size = 0x10000, scoped, tag = 'input window, operand 3, single buffered']
    #allocation11 [shape = 's32[1]{0}', space=sflag, size = 0x4, scoped, tag = 'scoped memory for tpu_custom_call.1']
    #allocation12 [shape = 'u8[65536]{0}', space=vmem, size = 0x10000, scoped, tag = 'input window, operand 4, single buffered']
    #allocation13 [shape = 'u8[65536]{0}', space=vmem, size = 0x10000, scoped, tag = 'input window, operand 5, single buffered']
    #allocation14 [shape = 's32[1]{0}', space=sflag, size = 0x4, scoped, tag = 'scoped memory for tpu_custom_call.1']
    #allocation15 [shape = 'u8[65536]{0}', space=vmem, size = 0x10000, scoped, tag = 'input window, operand 6, single buffered']
    #allocation16 [shape = 'u8[65536]{0}', space=vmem, size = 0x10000, scoped, tag = 'input window, operand 7, single buffered']
    #allocation17 [shape = 's32[1]{0}', space=sflag, size = 0x4, scoped, tag = 'scoped memory for tpu_custom_call.1']
    #allocation18 [shape = 'u8[65536]{0}', space=vmem, size = 0x10000, scoped, tag = 'input window, operand 8, single buffered']
    #allocation19 [shape = 'u8[65536]{0}', space=vmem, size = 0x10000, scoped, tag = 'input window, operand 9, single buffered']
    #allocation20 [shape = 's32[1]{0}', space=sflag, size = 0x4, scoped, tag = 'scoped memory for tpu_custom_call.1']
    #allocation21 [shape = 'u8[65536]{0}', space=vmem, size = 0x10000, scoped, tag = 'input window, operand 10, single buffered']
    #allocation22 [shape = 'u8[4096]{0}', space=vmem, size = 0x1000, scoped, tag = 'output window, operand 0, single buffered']
    #allocation23 [shape = 'u8[4096]{0}', space=vmem, size = 0x1000, scoped, tag = 'output window, operand 1, single buffered']
    #allocation24 [shape = 's32[1]{0}', space=sflag, size = 0x4, scoped, tag = 'scoped memory for tpu_custom_call.1']
    %19 = vsyncpa [#allocation5], 0
    %20 = vsyncpa [#allocation8], 0
    %21 = vsyncpa [#allocation11], 0
    %22 = vsyncpa [#allocation14], 0
    %23 = vsyncpa [#allocation17], 0
    %24 = vsyncpa [#allocation20], 0
    %25 = vsyncpa [#allocation6], 0
    %26 = vsyncpa [#allocation24], 0
    // Predicated region
    $region2: #{tpu_custom_call.1} parent=1 // pred_check
      _
    $region3: #{tpu_custom_call.1} parent=1 // pred_check_branch
      %28 = sbr.rel (0) target = $region5
    $region4: #{tpu_custom_call.1} parent=1 // pred_region
      %s30 = ssub.s32 1024, 1024
      %31 = vsyncadd [#allocation5], %s30
      %s32 = sshll.u32 [#allocation4], 4
      %s33 = int_to_ptr.vmem [resolvable:$true] %s32
      %38 = dma.hbm_to_vmem [thread:$0]  %s0, 1024, %s33, [#allocation5], 128, 128, 8
    $region5: #{tpu_custom_call.1} parent=1 // pred_fallthru
      _
    // Predicated region
    $region6: #{tpu_custom_call.1} parent=1 // pred_check
      _
    $region7: #{tpu_custom_call.1} parent=1 // pred_check_branch
      %40 = sbr.rel (0) target = $region9
    $region8: #{tpu_custom_call.1} parent=1 // pred_region
      %s42 = ssub.s32 1024, 1024
      %43 = vsyncadd [#allocation8], %s42
      %s44 = sshll.u32 [#allocation7], 4
      %s45 = int_to_ptr.vmem [resolvable:$true] %s44
      %50 = dma.hbm_to_vmem [thread:$0]  %s1, 1024, %s45, [#allocation8], 128, 128, 8
    $region9: #{tpu_custom_call.1} parent=1 // pred_fallthru
      _
    // Predicated region
    $region10: #{tpu_custom_call.1} parent=1 // pred_check
      _
    $region11: #{tpu_custom_call.1} parent=1 // pred_check_branch
      %52 = sbr.rel (0) target = $region13
    $region12: #{tpu_custom_call.1} parent=1 // pred_region
      %s54 = ssub.s32 4096, 4096
      %55 = vsyncadd [#allocation8], %s54
      %s56 = sshll.u32 [#allocation9], 4
      %s57 = int_to_ptr.vmem [resolvable:$true] %s56
      %62 = dma.hbm_to_vmem [thread:$0]  %s2, 4096, %s57, [#allocation8], 256, 256, 16
    $region13: #{tpu_custom_call.1} parent=1 // pred_fallthru
      _
    // Predicated region
    $region14: #{tpu_custom_call.1} parent=1 // pred_check
      _
    $region15: #{tpu_custom_call.1} parent=1 // pred_check_branch
      %64 = sbr.rel (0) target = $region17
    $region16: #{tpu_custom_call.1} parent=1 // pred_region
      %s66 = ssub.s32 2048, 2048
      %67 = vsyncadd [#allocation11], %s66
      %s68 = sshll.u32 [#allocation10], 4
      %s69 = int_to_ptr.vmem [resolvable:$true] %s68
      %74 = dma.hbm_to_vmem [thread:$0]  %s3, 2048, %s69, [#allocation11], 64, 64, 4
    $region17: #{tpu_custom_call.1} parent=1 // pred_fallthru
      _
    // Predicated region
    $region18: #{tpu_custom_call.1} parent=1 // pred_check
      _
    $region19: #{tpu_custom_call.1} parent=1 // pred_check_branch
      %76 = sbr.rel (0) target = $region21
    $region20: #{tpu_custom_call.1} parent=1 // pred_region
      %s78 = ssub.s32 2048, 2048
      %79 = vsyncadd [#allocation11], %s78
      %s80 = sshll.u32 [#allocation12], 4
      %s81 = int_to_ptr.vmem [resolvable:$true] %s80
      %86 = dma.hbm_to_vmem [thread:$0]  %s4, 2048, %s81, [#allocation11], 128, 128, 8
    $region21: #{tpu_custom_call.1} parent=1 // pred_fallthru
      _
    // Predicated region
    $region22: #{tpu_custom_call.1} parent=1 // pred_check
      _
    $region23: #{tpu_custom_call.1} parent=1 // pred_check_branch
      %88 = sbr.rel (0) target = $region25
    $region24: #{tpu_custom_call.1} parent=1 // pred_region
      %s90 = ssub.s32 2048, 2048
      %91 = vsyncadd [#allocation14], %s90
      %s92 = sshll.u32 [#allocation13], 4
      %s93 = int_to_ptr.vmem [resolvable:$true] %s92
      %98 = dma.hbm_to_vmem [thread:$0]  %s5, 2048, %s93, [#allocation14], 64, 64, 4
    $region25: #{tpu_custom_call.1} parent=1 // pred_fallthru
      _
    // Predicated region
    $region26: #{tpu_custom_call.1} parent=1 // pred_check
      _
    $region27: #{tpu_custom_call.1} parent=1 // pred_check_branch
      %100 = sbr.rel (0) target = $region29
    $region28: #{tpu_custom_call.1} parent=1 // pred_region
      %s102 = ssub.s32 2048, 2048
      %103 = vsyncadd [#allocation14], %s102
      %s104 = sshll.u32 [#allocation15], 4
      %s105 = int_to_ptr.vmem [resolvable:$true] %s104
      %110 = dma.hbm_to_vmem [thread:$0]  %s6, 2048, %s105, [#allocation14], 64, 64, 4
    $region29: #{tpu_custom_call.1} parent=1 // pred_fallthru
      _
    // Predicated region
    $region30: #{tpu_custom_call.1} parent=1 // pred_check
      _
    $region31: #{tpu_custom_call.1} parent=1 // pred_check_branch
      %112 = sbr.rel (0) target = $region33
    $region32: #{tpu_custom_call.1} parent=1 // pred_region
      %s114 = ssub.s32 2048, 2048
      %115 = vsyncadd [#allocation17], %s114
      %s116 = sshll.u32 [#allocation16], 4
      %s117 = int_to_ptr.vmem [resolvable:$true] %s116
      %122 = dma.hbm_to_vmem [thread:$0]  %s7, 2048, %s117, [#allocation17], 128, 128, 8
    $region33: #{tpu_custom_call.1} parent=1 // pred_fallthru
      _
    // Predicated region
    $region34: #{tpu_custom_call.1} parent=1 // pred_check
      _
    $region35: #{tpu_custom_call.1} parent=1 // pred_check_branch
      %124 = sbr.rel (0) target = $region37
    $region36: #{tpu_custom_call.1} parent=1 // pred_region
      %s126 = ssub.s32 2048, 2048
      %127 = vsyncadd [#allocation17], %s126
      %s128 = sshll.u32 [#allocation18], 4
      %s129 = int_to_ptr.vmem [resolvable:$true] %s128
      %134 = dma.hbm_to_vmem [thread:$0]  %s8, 2048, %s129, [#allocation17], 64, 64, 4
    $region37: #{tpu_custom_call.1} parent=1 // pred_fallthru
      _
    // Predicated region
    $region38: #{tpu_custom_call.1} parent=1 // pred_check
      _
    $region39: #{tpu_custom_call.1} parent=1 // pred_check_branch
      %136 = sbr.rel (0) target = $region41
    $region40: #{tpu_custom_call.1} parent=1 // pred_region
      %s138 = ssub.s32 2048, 2048
      %139 = vsyncadd [#allocation20], %s138
      %s140 = sshll.u32 [#allocation19], 4
      %s141 = int_to_ptr.vmem [resolvable:$true] %s140
      %146 = dma.hbm_to_vmem [thread:$0]  %s9, 2048, %s141, [#allocation20], 128, 128, 8
    $region41: #{tpu_custom_call.1} parent=1 // pred_fallthru
      _
    // Predicated region
    $region42: #{tpu_custom_call.1} parent=1 // pred_check
      _
    $region43: #{tpu_custom_call.1} parent=1 // pred_check_branch
      %148 = sbr.rel (0) target = $region45
    $region44: #{tpu_custom_call.1} parent=1 // pred_region
      %s150 = ssub.s32 2048, 2048
      %151 = vsyncadd [#allocation20], %s150
      %s152 = sshll.u32 [#allocation21], 4
      %s153 = int_to_ptr.vmem [resolvable:$true] %s152
      %158 = dma.hbm_to_vmem [thread:$0]  %s10, 2048, %s153, [#allocation20], 64, 64, 4
    $region45: #{tpu_custom_call.1} parent=1 // pred_fallthru
      _
    // Predicated region
    $region46: #{tpu_custom_call.1} parent=1 // pred_check
      _
    $region47: #{tpu_custom_call.1} parent=1 // pred_check_branch
      %160 = sbr.rel (0) target = $region49
    $region48: #{tpu_custom_call.1} parent=1 // pred_region
      _
    $region49: #{tpu_custom_call.1} parent=1 // pred_fallthru
      _
    // Predicated region
    $region50: #{tpu_custom_call.1} parent=1 // pred_check
      _
    $region51: #{tpu_custom_call.1} parent=1 // pred_check_branch
      %162 = sbr.rel (0) target = $region53
    $region52: #{tpu_custom_call.1} parent=1 // pred_region
      %163 = dma.done [#allocation5], 1024
    $region53: #{tpu_custom_call.1} parent=1 // pred_fallthru
      _
    // Predicated region
    $region54: #{tpu_custom_call.1} parent=1 // pred_check
      _
    $region55: #{tpu_custom_call.1} parent=1 // pred_check_branch
      %165 = sbr.rel (0) target = $region57
    $region56: #{tpu_custom_call.1} parent=1 // pred_region
      %166 = dma.done [#allocation8], 1024
    $region57: #{tpu_custom_call.1} parent=1 // pred_fallthru
      _
    // Predicated region
    $region58: #{tpu_custom_call.1} parent=1 // pred_check
      _
    $region59: #{tpu_custom_call.1} parent=1 // pred_check_branch
      %168 = sbr.rel (0) target = $region61
    $region60: #{tpu_custom_call.1} parent=1 // pred_region
      %169 = dma.done [#allocation8], 4096
    $region61: #{tpu_custom_call.1} parent=1 // pred_fallthru
      _
    // Predicated region
    $region62: #{tpu_custom_call.1} parent=1 // pred_check
      _
    $region63: #{tpu_custom_call.1} parent=1 // pred_check_branch
      %171 = sbr.rel (0) target = $region65
    $region64: #{tpu_custom_call.1} parent=1 // pred_region
      %172 = dma.done [#allocation11], 2048
    $region65: #{tpu_custom_call.1} parent=1 // pred_fallthru
      _
    // Predicated region
    $region66: #{tpu_custom_call.1} parent=1 // pred_check
      _
    $region67: #{tpu_custom_call.1} parent=1 // pred_check_branch
      %174 = sbr.rel (0) target = $region69
    $region68: #{tpu_custom_call.1} parent=1 // pred_region
      %175 = dma.done [#allocation11], 2048
    $region69: #{tpu_custom_call.1} parent=1 // pred_fallthru
      _
    // Predicated region
    $region70: #{tpu_custom_call.1} parent=1 // pred_check
      _
    $region71: #{tpu_custom_call.1} parent=1 // pred_check_branch
      %177 = sbr.rel (0) target = $region73
    $region72: #{tpu_custom_call.1} parent=1 // pred_region
      %178 = dma.done [#allocation14], 2048
    $region73: #{tpu_custom_call.1} parent=1 // pred_fallthru
      _
    // Predicated region
    $region74: #{tpu_custom_call.1} parent=1 // pred_check
      _
    $region75: #{tpu_custom_call.1} parent=1 // pred_check_branch
      %180 = sbr.rel (0) target = $region77
    $region76: #{tpu_custom_call.1} parent=1 // pred_region
      %181 = dma.done [#allocation14], 2048
    $region77: #{tpu_custom_call.1} parent=1 // pred_fallthru
      _
    // Predicated region
    $region78: #{tpu_custom_call.1} parent=1 // pred_check
      _
    $region79: #{tpu_custom_call.1} parent=1 // pred_check_branch
      %183 = sbr.rel (0) target = $region81
    $region80: #{tpu_custom_call.1} parent=1 // pred_region
      %184 = dma.done [#allocation17], 2048
    $region81: #{tpu_custom_call.1} parent=1 // pred_fallthru
      _
    // Predicated region
    $region82: #{tpu_custom_call.1} parent=1 // pred_check
      _
    $region83: #{tpu_custom_call.1} parent=1 // pred_check_branch
      %186 = sbr.rel (0) target = $region85
    $region84: #{tpu_custom_call.1} parent=1 // pred_region
      %187 = dma.done [#allocation17], 2048
    $region85: #{tpu_custom_call.1} parent=1 // pred_fallthru
      _
    // Predicated region
    $region86: #{tpu_custom_call.1} parent=1 // pred_check
      _
    $region87: #{tpu_custom_call.1} parent=1 // pred_check_branch
      %189 = sbr.rel (0) target = $region89
    $region88: #{tpu_custom_call.1} parent=1 // pred_region
      %190 = dma.done [#allocation20], 2048
    $region89: #{tpu_custom_call.1} parent=1 // pred_fallthru
      _
    // Predicated region
    $region90: #{tpu_custom_call.1} parent=1 // pred_check
      _
    $region91: #{tpu_custom_call.1} parent=1 // pred_check_branch
      %192 = sbr.rel (0) target = $region93
    $region92: #{tpu_custom_call.1} parent=1 // pred_region
      %193 = dma.done [#allocation20], 2048
    $region93: #{tpu_custom_call.1} parent=1 // pred_fallthru
      _
    %p195 = scmp.eq.s32.totalorder 0, 0
    // Predicated region
    $region94: #{tpu_custom_call.1} parent=1 // pred_check
      %p196 = pneg %p195
    $region95: #{tpu_custom_call.1} parent=1 // pred_check_branch
      %198 = sbr.rel (%p196) target = $region97
    $region96: #{tpu_custom_call.1} parent=1 // pred_region
      %199 = vst [vmem:[#allocation2] sm:$0xff] 0.0
      %200 = vst [vmem:[#allocation3] sm:$0xff] 0.0
    $region97: #{tpu_custom_call.1} parent=1 // pred_fallthru
      _
    %v201 = vld [vmem:[#allocation4] sm:$0xff]
    %v202 = vld [vmem:[#allocation4 + $0x8] sm:$0xff]
    %v203 = vld [vmem:[#allocation4 + $0x10] sm:$0xff]
    %v204 = vld [vmem:[#allocation4 + $0x18] sm:$0xff]
    %v205 = vld [vmem:[#allocation4 + $0x20] sm:$0xff]
    %v206 = vld [vmem:[#allocation4 + $0x28] sm:$0xff]
    %v207 = vld [vmem:[#allocation4 + $0x30] sm:$0xff]
    %v208 = vld [vmem:[#allocation4 + $0x38] sm:$0xff]
    %v209 = vld [vmem:[#allocation7] sm:$0xff]
    %v210 = vld [vmem:[#allocation7 + $0x8] sm:$0xff]
    %v211 = vld [vmem:[#allocation7 + $0x10] sm:$0xff]
    %v212 = vld [vmem:[#allocation7 + $0x18] sm:$0xff]
    %v213 = vld [vmem:[#allocation7 + $0x20] sm:$0xff]
    %v214 = vld [vmem:[#allocation7 + $0x28] sm:$0xff]
    %v215 = vld [vmem:[#allocation7 + $0x30] sm:$0xff]
    %v216 = vld [vmem:[#allocation7 + $0x38] sm:$0xff]
    %v217 = vpack.c.bf16 %v202, %v201
    %v218 = vpack.c.bf16 %v204, %v203
    %v219 = vpack.c.bf16 %v206, %v205
    %v220 = vpack.c.bf16 %v208, %v207
    %v221 = vld [vmem:[%s11] sm:$0xf]
    %v222 = vld [vmem:[#allocation9] sm:$0xff]
    %v223 = vld [vmem:[#allocation9 + $0x8] sm:$0xff]
    %v224 = vld [vmem:[#allocation9 + $0x10] sm:$0xff]
    %v225 = vld [vmem:[#allocation9 + $0x18] sm:$0xff]
    %v226 = vld [vmem:[#allocation9 + $0x20] sm:$0xff]
    %v227 = vld [vmem:[#allocation9 + $0x28] sm:$0xff]
    %v228 = vld [vmem:[#allocation9 + $0x30] sm:$0xff]
    %v229 = vld [vmem:[#allocation9 + $0x38] sm:$0xff]
    %v230 = vld [vmem:[#allocation9 + $0x40] sm:$0xff]
    %v231 = vld [vmem:[#allocation9 + $0x48] sm:$0xff]
    %v232 = vld [vmem:[#allocation9 + $0x50] sm:$0xff]
    %v233 = vld [vmem:[#allocation9 + $0x58] sm:$0xff]
    %v234 = vld [vmem:[#allocation9 + $0x60] sm:$0xff]
    %v235 = vld [vmem:[#allocation9 + $0x68] sm:$0xff]
    %v236 = vld [vmem:[#allocation9 + $0x70] sm:$0xff]
    %v237 = vld [vmem:[#allocation9 + $0x78] sm:$0xff]
    %v238 = vld [vmem:[#allocation9 + $0x80] sm:$0xff]
    %v239 = vld [vmem:[#allocation9 + $0x88] sm:$0xff]
    %v240 = vld [vmem:[#allocation9 + $0x90] sm:$0xff]
    %v241 = vld [vmem:[#allocation9 + $0x98] sm:$0xff]
    %v242 = vld [vmem:[#allocation9 + $0xa0] sm:$0xff]
    %v243 = vld [vmem:[#allocation9 + $0xa8] sm:$0xff]
    %v244 = vld [vmem:[#allocation9 + $0xb0] sm:$0xff]
    %v245 = vld [vmem:[#allocation9 + $0xb8] sm:$0xff]
    %v246 = vld [vmem:[#allocation9 + $0xc0] sm:$0xff]
    %v247 = vld [vmem:[#allocation9 + $0xc8] sm:$0xff]
    %v248 = vld [vmem:[#allocation9 + $0xd0] sm:$0xff]
    %v249 = vld [vmem:[#allocation9 + $0xd8] sm:$0xff]
    %v250 = vld [vmem:[#allocation9 + $0xe0] sm:$0xff]
    %v251 = vld [vmem:[#allocation9 + $0xe8] sm:$0xff]
    %v252 = vld [vmem:[#allocation9 + $0xf0] sm:$0xff]
    %v253 = vld [vmem:[#allocation9 + $0xf8] sm:$0xff]
    %v255 = vlaneseq
    %v256 = vshrl.u32 %v255, 7
    %v257 = vsub.s32 0, %v256
    %v258 = vrot.slane %v221, %v257
    %v259 = vlaneseq
    %v260 = vshrl.u32 %v259, 7
    %v261 = vsub.s32 1, %v260
    %v262 = vrot.slane %v221, %v261
    %v263 = vlaneseq
    %v264 = vshrl.u32 %v263, 7
    %v265 = vsub.s32 2, %v264
    %v266 = vrot.slane %v221, %v265
    %v267 = vlaneseq
    %v268 = vshrl.u32 %v267, 7
    %v269 = vsub.s32 3, %v268
    %v270 = vrot.slane %v221, %v269
    %v307 = vunpack.c.l.b16 %v222
    %v308 = vunpack.c.h.b16 %v222
    %v309 = vunpack.c.l.b16 %v223
    %v310 = vunpack.c.h.b16 %v223
    %v311 = vunpack.c.l.b16 %v224
    %v312 = vunpack.c.h.b16 %v224
    %v313 = vunpack.c.l.b16 %v225
    %v314 = vunpack.c.h.b16 %v225
    %v315 = vunpack.c.l.b16 %v226
    %v316 = vunpack.c.h.b16 %v226
    %v317 = vunpack.c.l.b16 %v227
    %v318 = vunpack.c.h.b16 %v227
    %v319 = vunpack.c.l.b16 %v228
    %v320 = vunpack.c.h.b16 %v228
    %v321 = vunpack.c.l.b16 %v229
    %v322 = vunpack.c.h.b16 %v229
    %v323 = vunpack.c.l.b16 %v230
    %v324 = vunpack.c.h.b16 %v230
    %v325 = vunpack.c.l.b16 %v231
    %v326 = vunpack.c.h.b16 %v231
    %v327 = vunpack.c.l.b16 %v232
    %v328 = vunpack.c.h.b16 %v232
    %v329 = vunpack.c.l.b16 %v233
    %v330 = vunpack.c.h.b16 %v233
    %v331 = vunpack.c.l.b16 %v234
    %v332 = vunpack.c.h.b16 %v234
    %v333 = vunpack.c.l.b16 %v235
    %v334 = vunpack.c.h.b16 %v235
    %v335 = vunpack.c.l.b16 %v236
    %v336 = vunpack.c.h.b16 %v236
    %v337 = vunpack.c.l.b16 %v237
    %v338 = vunpack.c.h.b16 %v237
    %v339 = vunpack.c.l.b16 %v238
    %v340 = vunpack.c.h.b16 %v238
    %v341 = vunpack.c.l.b16 %v239
    %v342 = vunpack.c.h.b16 %v239
    %v343 = vunpack.c.l.b16 %v240
    %v344 = vunpack.c.h.b16 %v240
    %v345 = vunpack.c.l.b16 %v241
    %v346 = vunpack.c.h.b16 %v241
    %v347 = vunpack.c.l.b16 %v242
    %v348 = vunpack.c.h.b16 %v242
    %v349 = vunpack.c.l.b16 %v243
    %v350 = vunpack.c.h.b16 %v243
    %v351 = vunpack.c.l.b16 %v244
    %v352 = vunpack.c.h.b16 %v244
    %v353 = vunpack.c.l.b16 %v245
    %v354 = vunpack.c.h.b16 %v245
    %v355 = vunpack.c.l.b16 %v246
    %v356 = vunpack.c.h.b16 %v246
    %v357 = vunpack.c.l.b16 %v247
    %v358 = vunpack.c.h.b16 %v247
    %v359 = vunpack.c.l.b16 %v248
    %v360 = vunpack.c.h.b16 %v248
    %v361 = vunpack.c.l.b16 %v249
    %v362 = vunpack.c.h.b16 %v249
    %v363 = vunpack.c.l.b16 %v250
    %v364 = vunpack.c.h.b16 %v250
    %v365 = vunpack.c.l.b16 %v251
    %v366 = vunpack.c.h.b16 %v251
    %v367 = vunpack.c.l.b16 %v252
    %v368 = vunpack.c.h.b16 %v252
    %v369 = vunpack.c.l.b16 %v253
    %v370 = vunpack.c.h.b16 %v253
    %v371 = vpack.c.b16 %v311, %v307
    %v372 = vpack.c.b16 %v312, %v308
    %v373 = vpack.c.b16 %v313, %v309
    %v374 = vpack.c.b16 %v314, %v310
    %v375 = vpack.c.b16 %v319, %v315
    %v376 = vpack.c.b16 %v320, %v316
    %v377 = vpack.c.b16 %v321, %v317
    %v378 = vpack.c.b16 %v322, %v318
    %v379 = vpack.c.b16 %v327, %v323
    %v380 = vpack.c.b16 %v328, %v324
    %v381 = vpack.c.b16 %v329, %v325
    %v382 = vpack.c.b16 %v330, %v326
    %v383 = vpack.c.b16 %v335, %v331
    %v384 = vpack.c.b16 %v336, %v332
    %v385 = vpack.c.b16 %v337, %v333
    %v386 = vpack.c.b16 %v338, %v334
    %v387 = vpack.c.b16 %v343, %v339
    %v388 = vpack.c.b16 %v344, %v340
    %v389 = vpack.c.b16 %v345, %v341
    %v390 = vpack.c.b16 %v346, %v342
    %v391 = vpack.c.b16 %v351, %v347
    %v392 = vpack.c.b16 %v352, %v348
    %v393 = vpack.c.b16 %v353, %v349
    %v394 = vpack.c.b16 %v354, %v350
    %v395 = vpack.c.b16 %v359, %v355
    %v396 = vpack.c.b16 %v360, %v356
    %v397 = vpack.c.b16 %v361, %v357
    %v398 = vpack.c.b16 %v362, %v358
    %v399 = vpack.c.b16 %v367, %v363
    %v400 = vpack.c.b16 %v368, %v364
    %v401 = vpack.c.b16 %v369, %v365
    %v402 = vpack.c.b16 %v370, %v366
    %435 = vmatprep.subr.bf16.mxu0 %v400
    %436 = vmatpush1.bf16.msra.mxu0 %v399
    %437 = vmatprep.subr.bf16.mxu0 %v396
    %438 = vmatpush1.bf16.msra.mxu0 %v395
    %439 = vmatprep.subr.bf16.mxu0 %v392
    %440 = vmatpush1.bf16.msra.mxu0 %v391
    %441 = vmatprep.subr.bf16.mxu0 %v388
    %442 = vmatpush1.bf16.msra.mxu0 %v387
    %443 = vmatprep.subr.bf16.mxu0 %v384
    %444 = vmatpush1.bf16.msra.mxu0 %v383
    %445 = vmatprep.subr.bf16.mxu0 %v380
    %446 = vmatpush1.bf16.msra.mxu0 %v379
    %447 = vmatprep.subr.bf16.mxu0 %v376
    %448 = vmatpush1.bf16.msra.mxu0 %v375
    %449 = vmatprep.subr.bf16.mxu0 %v372
    %450 = vmatpush1.bf16.msra.mxu0 %v371
    %451 = vmatprep.subr.bf16.mxu0 0
    %452 = vmatpush2.bf16.msra.mxu0 0
    %453 = vmatprep.subr.bf16.mxu0 0
    %454 = vmatpush2.bf16.msra.mxu0 0
    %455 = vmatprep.subr.bf16.mxu0 0
    %456 = vmatpush2.bf16.msra.mxu0 0
    %457 = vmatprep.subr.bf16.mxu0 0
    %458 = vmatpush2.bf16.msra.mxu0 0
    %459 = vmatprep.subr.bf16.mxu0 0
    %460 = vmatpush2.bf16.msra.mxu0 0
    %461 = vmatprep.subr.bf16.mxu0 0
    %462 = vmatpush2.bf16.msra.mxu0 0
    %463 = vmatprep.subr.bf16.mxu0 0
    %464 = vmatpush2.bf16.msra.mxu0 0
    %465 = vmatprep.subr.bf16.mxu0 0
    %466 = vmatpush2.bf16.msra.mxu0 0
    %467 = vmatprep.mubr.bf16.mxu0 0
    %468 = vmatmul.mubr.bf16.gmra.mxu0 %v217
    %v469 = vpop.f32.mrf.mxu0
    %v470 = vadd.f32 %v258, %v469
    %v471 = vpop.f32.mrf.mxu0
    %v472 = vadd.f32 %v262, %v471
    %v473 = vpop.f32.mrf.mxu0
    %v474 = vadd.f32 %v258, %v473
    %v475 = vpop.f32.mrf.mxu0
    %v476 = vadd.f32 %v262, %v475
    %477 = vmatprep.mubr.bf16.mxu0 0
    %478 = vmatmul.mubr.bf16.gmra.mxu0 %v218
    %v479 = vpop.f32.mrf.mxu0
    %v480 = vadd.f32 %v258, %v479
    %v481 = vpop.f32.mrf.mxu0
    %v482 = vadd.f32 %v262, %v481
    %v483 = vpop.f32.mrf.mxu0
    %v484 = vadd.f32 %v258, %v483
    %v485 = vpop.f32.mrf.mxu0
    %v486 = vadd.f32 %v262, %v485
    %487 = vmatprep.mubr.bf16.mxu0 0
    %488 = vmatmul.mubr.bf16.gmra.mxu0 %v219
    %v489 = vpop.f32.mrf.mxu0
    %v490 = vadd.f32 %v258, %v489
    %v491 = vpop.f32.mrf.mxu0
    %v492 = vadd.f32 %v262, %v491
    %v493 = vpop.f32.mrf.mxu0
    %v494 = vadd.f32 %v258, %v493
    %v495 = vpop.f32.mrf.mxu0
    %v496 = vadd.f32 %v262, %v495
    %497 = vmatprep.mubr.bf16.mxu0 0
    %498 = vmatmul.mubr.bf16.gmra.mxu0 %v220
    %v499 = vpop.f32.mrf.mxu0
    %v500 = vadd.f32 %v258, %v499
    %v501 = vpop.f32.mrf.mxu0
    %v502 = vadd.f32 %v262, %v501
    %v503 = vpop.f32.mrf.mxu0
    %v504 = vadd.f32 %v258, %v503
    %v505 = vpop.f32.mrf.mxu0
    %v506 = vadd.f32 %v262, %v505
    %507 = vdwg.mxu0
    %508 = vmatprep.subr.bf16.mxu0 %v402
    %509 = vmatpush1.bf16.msra.mxu0 %v401
    %510 = vmatprep.subr.bf16.mxu0 %v398
    %511 = vmatpush1.bf16.msra.mxu0 %v397
    %512 = vmatprep.subr.bf16.mxu0 %v394
    %513 = vmatpush1.bf16.msra.mxu0 %v393
    %514 = vmatprep.subr.bf16.mxu0 %v390
    %515 = vmatpush1.bf16.msra.mxu0 %v389
    %516 = vmatprep.subr.bf16.mxu0 %v386
    %517 = vmatpush1.bf16.msra.mxu0 %v385
    %518 = vmatprep.subr.bf16.mxu0 %v382
    %519 = vmatpush1.bf16.msra.mxu0 %v381
    %520 = vmatprep.subr.bf16.mxu0 %v378
    %521 = vmatpush1.bf16.msra.mxu0 %v377
    %522 = vmatprep.subr.bf16.mxu0 %v374
    %523 = vmatpush1.bf16.msra.mxu0 %v373
    %524 = vmatprep.subr.bf16.mxu0 0
    %525 = vmatpush2.bf16.msra.mxu0 0
    %526 = vmatprep.subr.bf16.mxu0 0
    %527 = vmatpush2.bf16.msra.mxu0 0
    %528 = vmatprep.subr.bf16.mxu0 0
    %529 = vmatpush2.bf16.msra.mxu0 0
    %530 = vmatprep.subr.bf16.mxu0 0
    %531 = vmatpush2.bf16.msra.mxu0 0
    %532 = vmatprep.subr.bf16.mxu0 0
    %533 = vmatpush2.bf16.msra.mxu0 0
    %534 = vmatprep.subr.bf16.mxu0 0
    %535 = vmatpush2.bf16.msra.mxu0 0
    %536 = vmatprep.subr.bf16.mxu0 0
    %537 = vmatpush2.bf16.msra.mxu0 0
    %538 = vmatprep.subr.bf16.mxu0 0
    %539 = vmatpush2.bf16.msra.mxu0 0
    %540 = vmatprep.mubr.bf16.mxu0 0
    %541 = vmatmul.mubr.bf16.gmra.mxu0 %v217
    %v542 = vpop.f32.mrf.mxu0
    %v543 = vadd.f32 %v266, %v542
    %v544 = vpop.f32.mrf.mxu0
    %v545 = vadd.f32 %v270, %v544
    %v546 = vpop.f32.mrf.mxu0
    %v547 = vadd.f32 %v266, %v546
    %v548 = vpop.f32.mrf.mxu0
    %v549 = vadd.f32 %v270, %v548
    %550 = vmatprep.mubr.bf16.mxu0 0
    %551 = vmatmul.mubr.bf16.gmra.mxu0 %v218
    %v552 = vpop.f32.mrf.mxu0
    %v553 = vadd.f32 %v266, %v552
    %v554 = vpop.f32.mrf.mxu0
    %v555 = vadd.f32 %v270, %v554
    %v556 = vpop.f32.mrf.mxu0
    %v557 = vadd.f32 %v266, %v556
    %v558 = vpop.f32.mrf.mxu0
    %v559 = vadd.f32 %v270, %v558
    %560 = vmatprep.mubr.bf16.mxu0 0
    %561 = vmatmul.mubr.bf16.gmra.mxu0 %v219
    %v562 = vpop.f32.mrf.mxu0
    %v563 = vadd.f32 %v266, %v562
    %v564 = vpop.f32.mrf.mxu0
    %v565 = vadd.f32 %v270, %v564
    %v566 = vpop.f32.mrf.mxu0
    %v567 = vadd.f32 %v266, %v566
    %v568 = vpop.f32.mrf.mxu0
    %v569 = vadd.f32 %v270, %v568
    %570 = vmatprep.mubr.bf16.mxu0 0
    %571 = vmatmul.mubr.bf16.gmra.mxu0 %v220
    %v572 = vpop.f32.mrf.mxu0
    %v573 = vadd.f32 %v266, %v572
    %v574 = vpop.f32.mrf.mxu0
    %v575 = vadd.f32 %v270, %v574
    %v576 = vpop.f32.mrf.mxu0
    %v577 = vadd.f32 %v266, %v576
    %v578 = vpop.f32.mrf.mxu0
    %v579 = vadd.f32 %v270, %v578
    %580 = vdwg.mxu0
    %v581 = vmax.f32 %v470, 0.0
    %v582 = vmax.f32 %v472, 0.0
    %v583 = vmax.f32 %v543, 0.0
    %v584 = vmax.f32 %v545, 0.0
    %v585 = vmax.f32 %v474, 0.0
    %v586 = vmax.f32 %v476, 0.0
    %v587 = vmax.f32 %v547, 0.0
    %v588 = vmax.f32 %v549, 0.0
    %v589 = vmax.f32 %v480, 0.0
    %v590 = vmax.f32 %v482, 0.0
    %v591 = vmax.f32 %v553, 0.0
    %v592 = vmax.f32 %v555, 0.0
    %v593 = vmax.f32 %v484, 0.0
    %v594 = vmax.f32 %v486, 0.0
    %v595 = vmax.f32 %v557, 0.0
    %v596 = vmax.f32 %v559, 0.0
    %v597 = vmax.f32 %v490, 0.0
    %v598 = vmax.f32 %v492, 0.0
    %v599 = vmax.f32 %v563, 0.0
    %v600 = vmax.f32 %v565, 0.0
    %v601 = vmax.f32 %v494, 0.0
    %v602 = vmax.f32 %v496, 0.0
    %v603 = vmax.f32 %v567, 0.0
    %v604 = vmax.f32 %v569, 0.0
    %v605 = vmax.f32 %v500, 0.0
    %v606 = vmax.f32 %v502, 0.0
    %v607 = vmax.f32 %v573, 0.0
    %v608 = vmax.f32 %v575, 0.0
    %v609 = vmax.f32 %v504, 0.0
    %v610 = vmax.f32 %v506, 0.0
    %v611 = vmax.f32 %v577, 0.0
    %v612 = vmax.f32 %v579, 0.0
    %v613 = vpack.c.bf16 %v585, %v581
    %v614 = vpack.c.bf16 %v586, %v582
    %v615 = vpack.c.bf16 %v587, %v583
    %v616 = vpack.c.bf16 %v588, %v584
    %v617 = vpack.c.bf16 %v593, %v589
    %v618 = vpack.c.bf16 %v594, %v590
    %v619 = vpack.c.bf16 %v595, %v591
    %v620 = vpack.c.bf16 %v596, %v592
    %v621 = vpack.c.bf16 %v601, %v597
    %v622 = vpack.c.bf16 %v602, %v598
    %v623 = vpack.c.bf16 %v603, %v599
    %v624 = vpack.c.bf16 %v604, %v600
    %v625 = vpack.c.bf16 %v609, %v605
    %v626 = vpack.c.bf16 %v610, %v606
    %v627 = vpack.c.bf16 %v611, %v607
    %v628 = vpack.c.bf16 %v612, %v608
    %v629 = vld [vmem:[%s11 + $0x4] sm:$0x1]
    %v630 = vld [vmem:[#allocation10] sm:$0xf]
    %v631 = vld [vmem:[#allocation10 + $0x4] sm:$0xf]
    %v632 = vld [vmem:[#allocation10 + $0x8] sm:$0xf]
    %v633 = vld [vmem:[#allocation10 + $0xc] sm:$0xf]
    %v634 = vld [vmem:[#allocation10 + $0x10] sm:$0xf]
    %v635 = vld [vmem:[#allocation10 + $0x14] sm:$0xf]
    %v636 = vld [vmem:[#allocation10 + $0x18] sm:$0xf]
    %v637 = vld [vmem:[#allocation10 + $0x1c] sm:$0xf]
    %v638 = vld [vmem:[#allocation10 + $0x20] sm:$0xf]
    %v639 = vld [vmem:[#allocation10 + $0x24] sm:$0xf]
    %v640 = vld [vmem:[#allocation10 + $0x28] sm:$0xf]
    %v641 = vld [vmem:[#allocation10 + $0x2c] sm:$0xf]
    %v642 = vld [vmem:[#allocation10 + $0x30] sm:$0xf]
    %v643 = vld [vmem:[#allocation10 + $0x34] sm:$0xf]
    %v644 = vld [vmem:[#allocation10 + $0x38] sm:$0xf]
    %v645 = vld [vmem:[#allocation10 + $0x3c] sm:$0xf]
    %v646 = vld [vmem:[#allocation10 + $0x40] sm:$0xf]
    %v647 = vld [vmem:[#allocation10 + $0x44] sm:$0xf]
    %v648 = vld [vmem:[#allocation10 + $0x48] sm:$0xf]
    %v649 = vld [vmem:[#allocation10 + $0x4c] sm:$0xf]
    %v650 = vld [vmem:[#allocation10 + $0x50] sm:$0xf]
    %v651 = vld [vmem:[#allocation10 + $0x54] sm:$0xf]
    %v652 = vld [vmem:[#allocation10 + $0x58] sm:$0xf]
    %v653 = vld [vmem:[#allocation10 + $0x5c] sm:$0xf]
    %v654 = vld [vmem:[#allocation10 + $0x60] sm:$0xf]
    %v655 = vld [vmem:[#allocation10 + $0x64] sm:$0xf]
    %v656 = vld [vmem:[#allocation10 + $0x68] sm:$0xf]
    %v657 = vld [vmem:[#allocation10 + $0x6c] sm:$0xf]
    %v658 = vld [vmem:[#allocation10 + $0x70] sm:$0xf]
    %v659 = vld [vmem:[#allocation10 + $0x74] sm:$0xf]
    %v660 = vld [vmem:[#allocation10 + $0x78] sm:$0xf]
    %v661 = vld [vmem:[#allocation10 + $0x7c] sm:$0xf]
    %v663 = vlaneseq
    %v664 = vshrl.u32 %v663, 7
    %v665 = vsub.s32 0, %v664
    %v666 = vrot.slane %v629, %v665
    %v700 = vunpack.c.l.b16 %v630
    %v701 = vunpack.c.l.b16 %v631
    %v702 = vunpack.c.l.b16 %v632
    %v703 = vunpack.c.l.b16 %v633
    %v704 = vunpack.c.l.b16 %v634
    %v705 = vunpack.c.l.b16 %v635
    %v706 = vunpack.c.l.b16 %v636
    %v707 = vunpack.c.l.b16 %v637
    %v708 = vunpack.c.l.b16 %v638
    %v709 = vunpack.c.l.b16 %v639
    %v710 = vunpack.c.l.b16 %v640
    %v711 = vunpack.c.l.b16 %v641
    %v712 = vunpack.c.l.b16 %v642
    %v713 = vunpack.c.l.b16 %v643
    %v714 = vunpack.c.l.b16 %v644
    %v715 = vunpack.c.l.b16 %v645
    %v716 = vunpack.c.l.b16 %v646
    %v717 = vunpack.c.l.b16 %v647
    %v718 = vunpack.c.l.b16 %v648
    %v719 = vunpack.c.l.b16 %v649
    %v720 = vunpack.c.l.b16 %v650
    %v721 = vunpack.c.l.b16 %v651
    %v722 = vunpack.c.l.b16 %v652
    %v723 = vunpack.c.l.b16 %v653
    %v724 = vunpack.c.l.b16 %v654
    %v725 = vunpack.c.l.b16 %v655
    %v726 = vunpack.c.l.b16 %v656
    %v727 = vunpack.c.l.b16 %v657
    %v728 = vunpack.c.l.b16 %v658
    %v729 = vunpack.c.l.b16 %v659
    %v730 = vunpack.c.l.b16 %v660
    %v731 = vunpack.c.l.b16 %v661
    %v732 = vpack.c.b16 %v701, %v700
    %v733 = vpack.c.b16 %v703, %v702
    %v734 = vpack.c.b16 %v705, %v704
    %v735 = vpack.c.b16 %v707, %v706
    %v736 = vpack.c.b16 %v709, %v708
    %v737 = vpack.c.b16 %v711, %v710
    %v738 = vpack.c.b16 %v713, %v712
    %v739 = vpack.c.b16 %v715, %v714
    %v740 = vpack.c.b16 %v717, %v716
    %v741 = vpack.c.b16 %v719, %v718
    %v742 = vpack.c.b16 %v721, %v720
    %v743 = vpack.c.b16 %v723, %v722
    %v744 = vpack.c.b16 %v725, %v724
    %v745 = vpack.c.b16 %v727, %v726
    %v746 = vpack.c.b16 %v729, %v728
    %v747 = vpack.c.b16 %v731, %v730
    %764 = vmatprep.subr.bf16.mxu0 0
    %765 = vmatpush1.bf16.msra.mxu0 %v739
    %766 = vmatprep.subr.bf16.mxu0 0
    %767 = vmatpush1.bf16.msra.mxu0 %v738
    %768 = vmatprep.subr.bf16.mxu0 0
    %769 = vmatpush1.bf16.msra.mxu0 %v737
    %770 = vmatprep.subr.bf16.mxu0 0
    %771 = vmatpush1.bf16.msra.mxu0 %v736
    %772 = vmatprep.subr.bf16.mxu0 0
    %773 = vmatpush1.bf16.msra.mxu0 %v735
    %774 = vmatprep.subr.bf16.mxu0 0
    %775 = vmatpush1.bf16.msra.mxu0 %v734
    %776 = vmatprep.subr.bf16.mxu0 0
    %777 = vmatpush1.bf16.msra.mxu0 %v733
    %778 = vmatprep.subr.bf16.mxu0 0
    %779 = vmatpush1.bf16.msra.mxu0 %v732
    %780 = vmatprep.subr.bf16.mxu0 0
    %781 = vmatpush2.bf16.msra.mxu0 %v747
    %782 = vmatprep.subr.bf16.mxu0 0
    %783 = vmatpush2.bf16.msra.mxu0 %v746
    %784 = vmatprep.subr.bf16.mxu0 0
    %785 = vmatpush2.bf16.msra.mxu0 %v745
    %786 = vmatprep.subr.bf16.mxu0 0
    %787 = vmatpush2.bf16.msra.mxu0 %v744
    %788 = vmatprep.subr.bf16.mxu0 0
    %789 = vmatpush2.bf16.msra.mxu0 %v743
    %790 = vmatprep.subr.bf16.mxu0 0
    %791 = vmatpush2.bf16.msra.mxu0 %v742
    %792 = vmatprep.subr.bf16.mxu0 0
    %793 = vmatpush2.bf16.msra.mxu0 %v741
    %794 = vmatprep.subr.bf16.mxu0 0
    %795 = vmatpush2.bf16.msra.mxu0 %v740
    %796 = vmatprep.mubr.bf16.mxu0 %v614
    %797 = vmatmul.mubr.bf16.gmra.mxu0 %v613
    %v798 = vpop.f32.mrf.mxu0
    %v799 = vadd.f32 %v666, %v798
    %v800 = vpop.f32.mrf.mxu0
    %v801 = vpop.f32.mrf.mxu0
    %v802 = vadd.f32 %v666, %v801
    %v803 = vpop.f32.mrf.mxu0
    %804 = vmatprep.mubr.bf16.mxu0 %v618
    %805 = vmatmul.mubr.bf16.gmra.mxu0 %v617
    %v806 = vpop.f32.mrf.mxu0
    %v807 = vadd.f32 %v666, %v806
    %v808 = vpop.f32.mrf.mxu0
    %v809 = vpop.f32.mrf.mxu0
    %v810 = vadd.f32 %v666, %v809
    %v811 = vpop.f32.mrf.mxu0
    %812 = vmatprep.mubr.bf16.mxu0 %v622
    %813 = vmatmul.mubr.bf16.gmra.mxu0 %v621
    %v814 = vpop.f32.mrf.mxu0
    %v815 = vadd.f32 %v666, %v814
    %v816 = vpop.f32.mrf.mxu0
    %v817 = vpop.f32.mrf.mxu0
    %v818 = vadd.f32 %v666, %v817
    %v819 = vpop.f32.mrf.mxu0
    %820 = vmatprep.mubr.bf16.mxu0 %v626
    %821 = vmatmul.mubr.bf16.gmra.mxu0 %v625
    %v822 = vpop.f32.mrf.mxu0
    %v823 = vadd.f32 %v666, %v822
    %v824 = vpop.f32.mrf.mxu0
    %v825 = vpop.f32.mrf.mxu0
    %v826 = vadd.f32 %v666, %v825
    %v827 = vpop.f32.mrf.mxu0
    %828 = vdwg.mxu0
    %v829 = vmax.f32 %v799, 0.0
    %v830 = vmax.f32 %v802, 0.0
    %v831 = vmax.f32 %v807, 0.0
    %v832 = vmax.f32 %v810, 0.0
    %v833 = vmax.f32 %v815, 0.0
    %v834 = vmax.f32 %v818, 0.0
    %v835 = vmax.f32 %v823, 0.0
    %v836 = vmax.f32 %v826, 0.0
    %v837 = vpack.c.bf16 %v830, %v829
    %v838 = vpack.c.bf16 %v832, %v831
    %v839 = vpack.c.bf16 %v834, %v833
    %v840 = vpack.c.bf16 %v836, %v835
    %v841 = vld [vmem:[%s11 + $0x5] sm:$0x3]
    %v842 = vld [vmem:[#allocation12] sm:$0xff]
    %v843 = vld [vmem:[#allocation12 + $0x8] sm:$0xff]
    %v844 = vld [vmem:[#allocation12 + $0x10] sm:$0xff]
    %v845 = vld [vmem:[#allocation12 + $0x18] sm:$0xff]
    %v846 = vld [vmem:[#allocation12 + $0x20] sm:$0xff]
    %v847 = vld [vmem:[#allocation12 + $0x28] sm:$0xff]
    %v848 = vld [vmem:[#allocation12 + $0x30] sm:$0xff]
    %v849 = vld [vmem:[#allocation12 + $0x38] sm:$0xff]
    %v850 = vld [vmem:[#allocation12 + $0x40] sm:$0xff]
    %v851 = vld [vmem:[#allocation12 + $0x48] sm:$0xff]
    %v852 = vld [vmem:[#allocation12 + $0x50] sm:$0xff]
    %v853 = vld [vmem:[#allocation12 + $0x58] sm:$0xff]
    %v854 = vld [vmem:[#allocation12 + $0x60] sm:$0xff]
    %v855 = vld [vmem:[#allocation12 + $0x68] sm:$0xff]
    %v856 = vld [vmem:[#allocation12 + $0x70] sm:$0xff]
    %v857 = vld [vmem:[#allocation12 + $0x78] sm:$0xff]
    %v859 = vlaneseq
    %v860 = vshrl.u32 %v859, 7
    %v861 = vsub.s32 0, %v860
    %v862 = vrot.slane %v841, %v861
    %v863 = vlaneseq
    %v864 = vshrl.u32 %v863, 7
    %v865 = vsub.s32 1, %v864
    %v866 = vrot.slane %v841, %v865
    %v885 = vunpack.c.l.b16 %v842
    %v886 = vunpack.c.h.b16 %v842
    %v887 = vunpack.c.l.b16 %v843
    %v888 = vunpack.c.h.b16 %v843
    %v889 = vunpack.c.l.b16 %v844
    %v890 = vunpack.c.h.b16 %v844
    %v891 = vunpack.c.l.b16 %v845
    %v892 = vunpack.c.h.b16 %v845
    %v893 = vunpack.c.l.b16 %v846
    %v894 = vunpack.c.h.b16 %v846
    %v895 = vunpack.c.l.b16 %v847
    %v896 = vunpack.c.h.b16 %v847
    %v897 = vunpack.c.l.b16 %v848
    %v898 = vunpack.c.h.b16 %v848
    %v899 = vunpack.c.l.b16 %v849
    %v900 = vunpack.c.h.b16 %v849
    %v901 = vunpack.c.l.b16 %v850
    %v902 = vunpack.c.h.b16 %v850
    %v903 = vunpack.c.l.b16 %v851
    %v904 = vunpack.c.h.b16 %v851
    %v905 = vunpack.c.l.b16 %v852
    %v906 = vunpack.c.h.b16 %v852
    %v907 = vunpack.c.l.b16 %v853
    %v908 = vunpack.c.h.b16 %v853
    %v909 = vunpack.c.l.b16 %v854
    %v910 = vunpack.c.h.b16 %v854
    %v911 = vunpack.c.l.b16 %v855
    %v912 = vunpack.c.h.b16 %v855
    %v913 = vunpack.c.l.b16 %v856
    %v914 = vunpack.c.h.b16 %v856
    %v915 = vunpack.c.l.b16 %v857
    %v916 = vunpack.c.h.b16 %v857
    %v917 = vpack.c.b16 %v887, %v885
    %v918 = vpack.c.b16 %v888, %v886
    %v919 = vpack.c.b16 %v891, %v889
    %v920 = vpack.c.b16 %v892, %v890
    %v921 = vpack.c.b16 %v895, %v893
    %v922 = vpack.c.b16 %v896, %v894
    %v923 = vpack.c.b16 %v899, %v897
    %v924 = vpack.c.b16 %v900, %v898
    %v925 = vpack.c.b16 %v903, %v901
    %v926 = vpack.c.b16 %v904, %v902
    %v927 = vpack.c.b16 %v907, %v905
    %v928 = vpack.c.b16 %v908, %v906
    %v929 = vpack.c.b16 %v911, %v909
    %v930 = vpack.c.b16 %v912, %v910
    %v931 = vpack.c.b16 %v915, %v913
    %v932 = vpack.c.b16 %v916, %v914
    %949 = vmatprep.subr.bf16.mxu0 %v932
    %950 = vmatpush1.bf16.msra.mxu0 %v931
    %951 = vmatprep.subr.bf16.mxu0 %v930
    %952 = vmatpush1.bf16.msra.mxu0 %v929
    %953 = vmatprep.subr.bf16.mxu0 %v928
    %954 = vmatpush1.bf16.msra.mxu0 %v927
    %955 = vmatprep.subr.bf16.mxu0 %v926
    %956 = vmatpush1.bf16.msra.mxu0 %v925
    %957 = vmatprep.subr.bf16.mxu0 %v924
    %958 = vmatpush1.bf16.msra.mxu0 %v923
    %959 = vmatprep.subr.bf16.mxu0 %v922
    %960 = vmatpush1.bf16.msra.mxu0 %v921
    %961 = vmatprep.subr.bf16.mxu0 %v920
    %962 = vmatpush1.bf16.msra.mxu0 %v919
    %963 = vmatprep.subr.bf16.mxu0 %v918
    %964 = vmatpush1.bf16.msra.mxu0 %v917
    %965 = vmatprep.subr.bf16.mxu0 0
    %966 = vmatpush2.bf16.msra.mxu0 0
    %967 = vmatprep.subr.bf16.mxu0 0
    %968 = vmatpush2.bf16.msra.mxu0 0
    %969 = vmatprep.subr.bf16.mxu0 0
    %970 = vmatpush2.bf16.msra.mxu0 0
    %971 = vmatprep.subr.bf16.mxu0 0
    %972 = vmatpush2.bf16.msra.mxu0 0
    %973 = vmatprep.subr.bf16.mxu0 0
    %974 = vmatpush2.bf16.msra.mxu0 0
    %975 = vmatprep.subr.bf16.mxu0 0
    %976 = vmatpush2.bf16.msra.mxu0 0
    %977 = vmatprep.subr.bf16.mxu0 0
    %978 = vmatpush2.bf16.msra.mxu0 0
    %979 = vmatprep.subr.bf16.mxu0 0
    %980 = vmatpush2.bf16.msra.mxu0 0
    %981 = vmatprep.mubr.bf16.mxu0 0
    %982 = vmatmul.mubr.bf16.gmra.mxu0 %v837
    %v983 = vpop.f32.mrf.mxu0
    %v984 = vadd.f32 %v862, %v983
    %v985 = vpop.f32.mrf.mxu0
    %v986 = vadd.f32 %v866, %v985
    %v987 = vpop.f32.mrf.mxu0
    %v988 = vadd.f32 %v862, %v987
    %v989 = vpop.f32.mrf.mxu0
    %v990 = vadd.f32 %v866, %v989
    %991 = vmatprep.mubr.bf16.mxu0 0
    %992 = vmatmul.mubr.bf16.gmra.mxu0 %v838
    %v993 = vpop.f32.mrf.mxu0
    %v994 = vadd.f32 %v862, %v993
    %v995 = vpop.f32.mrf.mxu0
    %v996 = vadd.f32 %v866, %v995
    %v997 = vpop.f32.mrf.mxu0
    %v998 = vadd.f32 %v862, %v997
    %v999 = vpop.f32.mrf.mxu0
    %v1000 = vadd.f32 %v866, %v999
    %1001 = vmatprep.mubr.bf16.mxu0 0
    %1002 = vmatmul.mubr.bf16.gmra.mxu0 %v839
    %v1003 = vpop.f32.mrf.mxu0
    %v1004 = vadd.f32 %v862, %v1003
    %v1005 = vpop.f32.mrf.mxu0
    %v1006 = vadd.f32 %v866, %v1005
    %v1007 = vpop.f32.mrf.mxu0
    %v1008 = vadd.f32 %v862, %v1007
    %v1009 = vpop.f32.mrf.mxu0
    %v1010 = vadd.f32 %v866, %v1009
    %1011 = vmatprep.mubr.bf16.mxu0 0
    %1012 = vmatmul.mubr.bf16.gmra.mxu0 %v840
    %v1013 = vpop.f32.mrf.mxu0
    %v1014 = vadd.f32 %v862, %v1013
    %v1015 = vpop.f32.mrf.mxu0
    %v1016 = vadd.f32 %v866, %v1015
    %v1017 = vpop.f32.mrf.mxu0
    %v1018 = vadd.f32 %v862, %v1017
    %v1019 = vpop.f32.mrf.mxu0
    %v1020 = vadd.f32 %v866, %v1019
    %1021 = vdwg.mxu0
    %v1022 = vmax.f32 %v984, 0.0
    %v1023 = vmax.f32 %v986, 0.0
    %v1024 = vmax.f32 %v988, 0.0
    %v1025 = vmax.f32 %v990, 0.0
    %v1026 = vmax.f32 %v994, 0.0
    %v1027 = vmax.f32 %v996, 0.0
    %v1028 = vmax.f32 %v998, 0.0
    %v1029 = vmax.f32 %v1000, 0.0
    %v1030 = vmax.f32 %v1004, 0.0
    %v1031 = vmax.f32 %v1006, 0.0
    %v1032 = vmax.f32 %v1008, 0.0
    %v1033 = vmax.f32 %v1010, 0.0
    %v1034 = vmax.f32 %v1014, 0.0
    %v1035 = vmax.f32 %v1016, 0.0
    %v1036 = vmax.f32 %v1018, 0.0
    %v1037 = vmax.f32 %v1020, 0.0
    %v1038 = vpack.c.bf16 %v1024, %v1022
    %v1039 = vpack.c.bf16 %v1025, %v1023
    %v1040 = vpack.c.bf16 %v1028, %v1026
    %v1041 = vpack.c.bf16 %v1029, %v1027
    %v1042 = vpack.c.bf16 %v1032, %v1030
    %v1043 = vpack.c.bf16 %v1033, %v1031
    %v1044 = vpack.c.bf16 %v1036, %v1034
    %v1045 = vpack.c.bf16 %v1037, %v1035
    %v1046 = vld [vmem:[%s11 + $0x7] sm:$0x1]
    %v1047 = vld [vmem:[#allocation13] sm:$0xf]
    %v1048 = vld [vmem:[#allocation13 + $0x4] sm:$0xf]
    %v1049 = vld [vmem:[#allocation13 + $0x8] sm:$0xf]
    %v1050 = vld [vmem:[#allocation13 + $0xc] sm:$0xf]
    %v1051 = vld [vmem:[#allocation13 + $0x10] sm:$0xf]
    %v1052 = vld [vmem:[#allocation13 + $0x14] sm:$0xf]
    %v1053 = vld [vmem:[#allocation13 + $0x18] sm:$0xf]
    %v1054 = vld [vmem:[#allocation13 + $0x1c] sm:$0xf]
    %v1055 = vld [vmem:[#allocation13 + $0x20] sm:$0xf]
    %v1056 = vld [vmem:[#allocation13 + $0x24] sm:$0xf]
    %v1057 = vld [vmem:[#allocation13 + $0x28] sm:$0xf]
    %v1058 = vld [vmem:[#allocation13 + $0x2c] sm:$0xf]
    %v1059 = vld [vmem:[#allocation13 + $0x30] sm:$0xf]
    %v1060 = vld [vmem:[#allocation13 + $0x34] sm:$0xf]
    %v1061 = vld [vmem:[#allocation13 + $0x38] sm:$0xf]
    %v1062 = vld [vmem:[#allocation13 + $0x3c] sm:$0xf]
    %v1063 = vld [vmem:[#allocation13 + $0x40] sm:$0xf]
    %v1064 = vld [vmem:[#allocation13 + $0x44] sm:$0xf]
    %v1065 = vld [vmem:[#allocation13 + $0x48] sm:$0xf]
    %v1066 = vld [vmem:[#allocation13 + $0x4c] sm:$0xf]
    %v1067 = vld [vmem:[#allocation13 + $0x50] sm:$0xf]
    %v1068 = vld [vmem:[#allocation13 + $0x54] sm:$0xf]
    %v1069 = vld [vmem:[#allocation13 + $0x58] sm:$0xf]
    %v1070 = vld [vmem:[#allocation13 + $0x5c] sm:$0xf]
    %v1071 = vld [vmem:[#allocation13 + $0x60] sm:$0xf]
    %v1072 = vld [vmem:[#allocation13 + $0x64] sm:$0xf]
    %v1073 = vld [vmem:[#allocation13 + $0x68] sm:$0xf]
    %v1074 = vld [vmem:[#allocation13 + $0x6c] sm:$0xf]
    %v1075 = vld [vmem:[#allocation13 + $0x70] sm:$0xf]
    %v1076 = vld [vmem:[#allocation13 + $0x74] sm:$0xf]
    %v1077 = vld [vmem:[#allocation13 + $0x78] sm:$0xf]
    %v1078 = vld [vmem:[#allocation13 + $0x7c] sm:$0xf]
    %v1080 = vlaneseq
    %v1081 = vshrl.u32 %v1080, 7
    %v1082 = vsub.s32 0, %v1081
    %v1083 = vrot.slane %v1046, %v1082
    %v1117 = vunpack.c.l.b16 %v1047
    %v1118 = vunpack.c.l.b16 %v1048
    %v1119 = vunpack.c.l.b16 %v1049
    %v1120 = vunpack.c.l.b16 %v1050
    %v1121 = vunpack.c.l.b16 %v1051
    %v1122 = vunpack.c.l.b16 %v1052
    %v1123 = vunpack.c.l.b16 %v1053
    %v1124 = vunpack.c.l.b16 %v1054
    %v1125 = vunpack.c.l.b16 %v1055
    %v1126 = vunpack.c.l.b16 %v1056
    %v1127 = vunpack.c.l.b16 %v1057
    %v1128 = vunpack.c.l.b16 %v1058
    %v1129 = vunpack.c.l.b16 %v1059
    %v1130 = vunpack.c.l.b16 %v1060
    %v1131 = vunpack.c.l.b16 %v1061
    %v1132 = vunpack.c.l.b16 %v1062
    %v1133 = vunpack.c.l.b16 %v1063
    %v1134 = vunpack.c.l.b16 %v1064
    %v1135 = vunpack.c.l.b16 %v1065
    %v1136 = vunpack.c.l.b16 %v1066
    %v1137 = vunpack.c.l.b16 %v1067
    %v1138 = vunpack.c.l.b16 %v1068
    %v1139 = vunpack.c.l.b16 %v1069
    %v1140 = vunpack.c.l.b16 %v1070
    %v1141 = vunpack.c.l.b16 %v1071
    %v1142 = vunpack.c.l.b16 %v1072
    %v1143 = vunpack.c.l.b16 %v1073
    %v1144 = vunpack.c.l.b16 %v1074
    %v1145 = vunpack.c.l.b16 %v1075
    %v1146 = vunpack.c.l.b16 %v1076
    %v1147 = vunpack.c.l.b16 %v1077
    %v1148 = vunpack.c.l.b16 %v1078
    %v1149 = vpack.c.b16 %v1118, %v1117
    %v1150 = vpack.c.b16 %v1120, %v1119
    %v1151 = vpack.c.b16 %v1122, %v1121
    %v1152 = vpack.c.b16 %v1124, %v1123
    %v1153 = vpack.c.b16 %v1126, %v1125
    %v1154 = vpack.c.b16 %v1128, %v1127
    %v1155 = vpack.c.b16 %v1130, %v1129
    %v1156 = vpack.c.b16 %v1132, %v1131
    %v1157 = vpack.c.b16 %v1134, %v1133
    %v1158 = vpack.c.b16 %v1136, %v1135
    %v1159 = vpack.c.b16 %v1138, %v1137
    %v1160 = vpack.c.b16 %v1140, %v1139
    %v1161 = vpack.c.b16 %v1142, %v1141
    %v1162 = vpack.c.b16 %v1144, %v1143
    %v1163 = vpack.c.b16 %v1146, %v1145
    %v1164 = vpack.c.b16 %v1148, %v1147
    %1181 = vmatprep.subr.bf16.mxu0 0
    %1182 = vmatpush1.bf16.msra.mxu0 %v1156
    %1183 = vmatprep.subr.bf16.mxu0 0
    %1184 = vmatpush1.bf16.msra.mxu0 %v1155
    %1185 = vmatprep.subr.bf16.mxu0 0
    %1186 = vmatpush1.bf16.msra.mxu0 %v1154
    %1187 = vmatprep.subr.bf16.mxu0 0
    %1188 = vmatpush1.bf16.msra.mxu0 %v1153
    %1189 = vmatprep.subr.bf16.mxu0 0
    %1190 = vmatpush1.bf16.msra.mxu0 %v1152
    %1191 = vmatprep.subr.bf16.mxu0 0
    %1192 = vmatpush1.bf16.msra.mxu0 %v1151
    %1193 = vmatprep.subr.bf16.mxu0 0
    %1194 = vmatpush1.bf16.msra.mxu0 %v1150
    %1195 = vmatprep.subr.bf16.mxu0 0
    %1196 = vmatpush1.bf16.msra.mxu0 %v1149
    %1197 = vmatprep.subr.bf16.mxu0 0
    %1198 = vmatpush2.bf16.msra.mxu0 %v1164
    %1199 = vmatprep.subr.bf16.mxu0 0
    %1200 = vmatpush2.bf16.msra.mxu0 %v1163
    %1201 = vmatprep.subr.bf16.mxu0 0
    %1202 = vmatpush2.bf16.msra.mxu0 %v1162
    %1203 = vmatprep.subr.bf16.mxu0 0
    %1204 = vmatpush2.bf16.msra.mxu0 %v1161
    %1205 = vmatprep.subr.bf16.mxu0 0
    %1206 = vmatpush2.bf16.msra.mxu0 %v1160
    %1207 = vmatprep.subr.bf16.mxu0 0
    %1208 = vmatpush2.bf16.msra.mxu0 %v1159
    %1209 = vmatprep.subr.bf16.mxu0 0
    %1210 = vmatpush2.bf16.msra.mxu0 %v1158
    %1211 = vmatprep.subr.bf16.mxu0 0
    %1212 = vmatpush2.bf16.msra.mxu0 %v1157
    %1213 = vmatprep.mubr.bf16.mxu0 %v1039
    %1214 = vmatmul.mubr.bf16.gmra.mxu0 %v1038
    %v1215 = vpop.f32.mrf.mxu0
    %v1216 = vadd.f32 %v1083, %v1215
    %v1217 = vpop.f32.mrf.mxu0
    %v1218 = vpop.f32.mrf.mxu0
    %v1219 = vadd.f32 %v1083, %v1218
    %v1220 = vpop.f32.mrf.mxu0
    %1221 = vmatprep.mubr.bf16.mxu0 %v1041
    %1222 = vmatmul.mubr.bf16.gmra.mxu0 %v1040
    %v1223 = vpop.f32.mrf.mxu0
    %v1224 = vadd.f32 %v1083, %v1223
    %v1225 = vpop.f32.mrf.mxu0
    %v1226 = vpop.f32.mrf.mxu0
    %v1227 = vadd.f32 %v1083, %v1226
    %v1228 = vpop.f32.mrf.mxu0
    %1229 = vmatprep.mubr.bf16.mxu0 %v1043
    %1230 = vmatmul.mubr.bf16.gmra.mxu0 %v1042
    %v1231 = vpop.f32.mrf.mxu0
    %v1232 = vadd.f32 %v1083, %v1231
    %v1233 = vpop.f32.mrf.mxu0
    %v1234 = vpop.f32.mrf.mxu0
    %v1235 = vadd.f32 %v1083, %v1234
    %v1236 = vpop.f32.mrf.mxu0
    %1237 = vmatprep.mubr.bf16.mxu0 %v1045
    %1238 = vmatmul.mubr.bf16.gmra.mxu0 %v1044
    %v1239 = vpop.f32.mrf.mxu0
    %v1240 = vadd.f32 %v1083, %v1239
    %v1241 = vpop.f32.mrf.mxu0
    %v1242 = vpop.f32.mrf.mxu0
    %v1243 = vadd.f32 %v1083, %v1242
    %v1244 = vpop.f32.mrf.mxu0
    %1245 = vdwg.mxu0
    %v1246 = vmax.f32 %v1216, 0.0
    %v1247 = vmax.f32 %v1219, 0.0
    %v1248 = vmax.f32 %v1224, 0.0
    %v1249 = vmax.f32 %v1227, 0.0
    %v1250 = vmax.f32 %v1232, 0.0
    %v1251 = vmax.f32 %v1235, 0.0
    %v1252 = vmax.f32 %v1240, 0.0
    %v1253 = vmax.f32 %v1243, 0.0
    %v1254 = vld [vmem:[%s11 + $0x8] sm:$0x1]
    %v1255 = vld [vmem:[#allocation15] sm:$0xf]
    %v1256 = vld [vmem:[#allocation15 + $0x4] sm:$0xf]
    %v1257 = vld [vmem:[#allocation15 + $0x8] sm:$0xf]
    %v1258 = vld [vmem:[#allocation15 + $0xc] sm:$0xf]
    %v1259 = vld [vmem:[#allocation15 + $0x10] sm:$0xf]
    %v1260 = vld [vmem:[#allocation15 + $0x14] sm:$0xf]
    %v1261 = vld [vmem:[#allocation15 + $0x18] sm:$0xf]
    %v1262 = vld [vmem:[#allocation15 + $0x1c] sm:$0xf]
    %v1263 = vld [vmem:[#allocation15 + $0x20] sm:$0xf]
    %v1264 = vld [vmem:[#allocation15 + $0x24] sm:$0xf]
    %v1265 = vld [vmem:[#allocation15 + $0x28] sm:$0xf]
    %v1266 = vld [vmem:[#allocation15 + $0x2c] sm:$0xf]
    %v1267 = vld [vmem:[#allocation15 + $0x30] sm:$0xf]
    %v1268 = vld [vmem:[#allocation15 + $0x34] sm:$0xf]
    %v1269 = vld [vmem:[#allocation15 + $0x38] sm:$0xf]
    %v1270 = vld [vmem:[#allocation15 + $0x3c] sm:$0xf]
    %v1271 = vld [vmem:[#allocation15 + $0x40] sm:$0xf]
    %v1272 = vld [vmem:[#allocation15 + $0x44] sm:$0xf]
    %v1273 = vld [vmem:[#allocation15 + $0x48] sm:$0xf]
    %v1274 = vld [vmem:[#allocation15 + $0x4c] sm:$0xf]
    %v1275 = vld [vmem:[#allocation15 + $0x50] sm:$0xf]
    %v1276 = vld [vmem:[#allocation15 + $0x54] sm:$0xf]
    %v1277 = vld [vmem:[#allocation15 + $0x58] sm:$0xf]
    %v1278 = vld [vmem:[#allocation15 + $0x5c] sm:$0xf]
    %v1279 = vld [vmem:[#allocation15 + $0x60] sm:$0xf]
    %v1280 = vld [vmem:[#allocation15 + $0x64] sm:$0xf]
    %v1281 = vld [vmem:[#allocation15 + $0x68] sm:$0xf]
    %v1282 = vld [vmem:[#allocation15 + $0x6c] sm:$0xf]
    %v1283 = vld [vmem:[#allocation15 + $0x70] sm:$0xf]
    %v1284 = vld [vmem:[#allocation15 + $0x74] sm:$0xf]
    %v1285 = vld [vmem:[#allocation15 + $0x78] sm:$0xf]
    %v1286 = vld [vmem:[#allocation15 + $0x7c] sm:$0xf]
    %v1288 = vlaneseq
    %v1289 = vshrl.u32 %v1288, 7
    %v1290 = vsub.s32 0, %v1289
    %v1291 = vrot.slane %v1254, %v1290
    %v1325 = vunpack.c.l.b16 %v1255
    %v1326 = vunpack.c.l.b16 %v1256
    %v1327 = vunpack.c.l.b16 %v1257
    %v1328 = vunpack.c.l.b16 %v1258
    %v1329 = vunpack.c.l.b16 %v1259
    %v1330 = vunpack.c.l.b16 %v1260
    %v1331 = vunpack.c.l.b16 %v1261
    %v1332 = vunpack.c.l.b16 %v1262
    %v1333 = vunpack.c.l.b16 %v1263
    %v1334 = vunpack.c.l.b16 %v1264
    %v1335 = vunpack.c.l.b16 %v1265
    %v1336 = vunpack.c.l.b16 %v1266
    %v1337 = vunpack.c.l.b16 %v1267
    %v1338 = vunpack.c.l.b16 %v1268
    %v1339 = vunpack.c.l.b16 %v1269
    %v1340 = vunpack.c.l.b16 %v1270
    %v1341 = vunpack.c.l.b16 %v1271
    %v1342 = vunpack.c.l.b16 %v1272
    %v1343 = vunpack.c.l.b16 %v1273
    %v1344 = vunpack.c.l.b16 %v1274
    %v1345 = vunpack.c.l.b16 %v1275
    %v1346 = vunpack.c.l.b16 %v1276
    %v1347 = vunpack.c.l.b16 %v1277
    %v1348 = vunpack.c.l.b16 %v1278
    %v1349 = vunpack.c.l.b16 %v1279
    %v1350 = vunpack.c.l.b16 %v1280
    %v1351 = vunpack.c.l.b16 %v1281
    %v1352 = vunpack.c.l.b16 %v1282
    %v1353 = vunpack.c.l.b16 %v1283
    %v1354 = vunpack.c.l.b16 %v1284
    %v1355 = vunpack.c.l.b16 %v1285
    %v1356 = vunpack.c.l.b16 %v1286
    %v1357 = vpack.c.b16 %v1326, %v1325
    %v1358 = vpack.c.b16 %v1328, %v1327
    %v1359 = vpack.c.b16 %v1330, %v1329
    %v1360 = vpack.c.b16 %v1332, %v1331
    %v1361 = vpack.c.b16 %v1334, %v1333
    %v1362 = vpack.c.b16 %v1336, %v1335
    %v1363 = vpack.c.b16 %v1338, %v1337
    %v1364 = vpack.c.b16 %v1340, %v1339
    %v1365 = vpack.c.b16 %v1342, %v1341
    %v1366 = vpack.c.b16 %v1344, %v1343
    %v1367 = vpack.c.b16 %v1346, %v1345
    %v1368 = vpack.c.b16 %v1348, %v1347
    %v1369 = vpack.c.b16 %v1350, %v1349
    %v1370 = vpack.c.b16 %v1352, %v1351
    %v1371 = vpack.c.b16 %v1354, %v1353
    %v1372 = vpack.c.b16 %v1356, %v1355
    %1389 = vmatprep.subr.bf16.mxu0 0
    %1390 = vmatpush1.bf16.msra.mxu0 %v1364
    %1391 = vmatprep.subr.bf16.mxu0 0
    %1392 = vmatpush1.bf16.msra.mxu0 %v1363
    %1393 = vmatprep.subr.bf16.mxu0 0
    %1394 = vmatpush1.bf16.msra.mxu0 %v1362
    %1395 = vmatprep.subr.bf16.mxu0 0
    %1396 = vmatpush1.bf16.msra.mxu0 %v1361
    %1397 = vmatprep.subr.bf16.mxu0 0
    %1398 = vmatpush1.bf16.msra.mxu0 %v1360
    %1399 = vmatprep.subr.bf16.mxu0 0
    %1400 = vmatpush1.bf16.msra.mxu0 %v1359
    %1401 = vmatprep.subr.bf16.mxu0 0
    %1402 = vmatpush1.bf16.msra.mxu0 %v1358
    %1403 = vmatprep.subr.bf16.mxu0 0
    %1404 = vmatpush1.bf16.msra.mxu0 %v1357
    %1405 = vmatprep.subr.bf16.mxu0 0
    %1406 = vmatpush2.bf16.msra.mxu0 %v1372
    %1407 = vmatprep.subr.bf16.mxu0 0
    %1408 = vmatpush2.bf16.msra.mxu0 %v1371
    %1409 = vmatprep.subr.bf16.mxu0 0
    %1410 = vmatpush2.bf16.msra.mxu0 %v1370
    %1411 = vmatprep.subr.bf16.mxu0 0
    %1412 = vmatpush2.bf16.msra.mxu0 %v1369
    %1413 = vmatprep.subr.bf16.mxu0 0
    %1414 = vmatpush2.bf16.msra.mxu0 %v1368
    %1415 = vmatprep.subr.bf16.mxu0 0
    %1416 = vmatpush2.bf16.msra.mxu0 %v1367
    %1417 = vmatprep.subr.bf16.mxu0 0
    %1418 = vmatpush2.bf16.msra.mxu0 %v1366
    %1419 = vmatprep.subr.bf16.mxu0 0
    %1420 = vmatpush2.bf16.msra.mxu0 %v1365
    %1421 = vmatprep.mubr.bf16.mxu0 %v616
    %1422 = vmatmul.mubr.bf16.gmra.mxu0 %v615
    %v1423 = vpop.f32.mrf.mxu0
    %v1424 = vadd.f32 %v1291, %v1423
    %v1425 = vpop.f32.mrf.mxu0
    %v1426 = vpop.f32.mrf.mxu0
    %v1427 = vadd.f32 %v1291, %v1426
    %v1428 = vpop.f32.mrf.mxu0
    %1429 = vmatprep.mubr.bf16.mxu0 %v620
    %1430 = vmatmul.mubr.bf16.gmra.mxu0 %v619
    %v1431 = vpop.f32.mrf.mxu0
    %v1432 = vadd.f32 %v1291, %v1431
    %v1433 = vpop.f32.mrf.mxu0
    %v1434 = vpop.f32.mrf.mxu0
    %v1435 = vadd.f32 %v1291, %v1434
    %v1436 = vpop.f32.mrf.mxu0
    %1437 = vmatprep.mubr.bf16.mxu0 %v624
    %1438 = vmatmul.mubr.bf16.gmra.mxu0 %v623
    %v1439 = vpop.f32.mrf.mxu0
    %v1440 = vadd.f32 %v1291, %v1439
    %v1441 = vpop.f32.mrf.mxu0
    %v1442 = vpop.f32.mrf.mxu0
    %v1443 = vadd.f32 %v1291, %v1442
    %v1444 = vpop.f32.mrf.mxu0
    %1445 = vmatprep.mubr.bf16.mxu0 %v628
    %1446 = vmatmul.mubr.bf16.gmra.mxu0 %v627
    %v1447 = vpop.f32.mrf.mxu0
    %v1448 = vadd.f32 %v1291, %v1447
    %v1449 = vpop.f32.mrf.mxu0
    %v1450 = vpop.f32.mrf.mxu0
    %v1451 = vadd.f32 %v1291, %v1450
    %v1452 = vpop.f32.mrf.mxu0
    %1453 = vdwg.mxu0
    %v1454 = vmax.f32 %v1424, 0.0
    %v1455 = vmax.f32 %v1427, 0.0
    %v1456 = vmax.f32 %v1432, 0.0
    %v1457 = vmax.f32 %v1435, 0.0
    %v1458 = vmax.f32 %v1440, 0.0
    %v1459 = vmax.f32 %v1443, 0.0
    %v1460 = vmax.f32 %v1448, 0.0
    %v1461 = vmax.f32 %v1451, 0.0
    %v1462 = vpack.c.bf16 %v1455, %v1454
    %v1463 = vpack.c.bf16 %v1457, %v1456
    %v1464 = vpack.c.bf16 %v1459, %v1458
    %v1465 = vpack.c.bf16 %v1461, %v1460
    %v1466 = vld [vmem:[%s11 + $0x9] sm:$0x3]
    %v1467 = vld [vmem:[#allocation16] sm:$0xff]
    %v1468 = vld [vmem:[#allocation16 + $0x8] sm:$0xff]
    %v1469 = vld [vmem:[#allocation16 + $0x10] sm:$0xff]
    %v1470 = vld [vmem:[#allocation16 + $0x18] sm:$0xff]
    %v1471 = vld [vmem:[#allocation16 + $0x20] sm:$0xff]
    %v1472 = vld [vmem:[#allocation16 + $0x28] sm:$0xff]
    %v1473 = vld [vmem:[#allocation16 + $0x30] sm:$0xff]
    %v1474 = vld [vmem:[#allocation16 + $0x38] sm:$0xff]
    %v1475 = vld [vmem:[#allocation16 + $0x40] sm:$0xff]
    %v1476 = vld [vmem:[#allocation16 + $0x48] sm:$0xff]
    %v1477 = vld [vmem:[#allocation16 + $0x50] sm:$0xff]
    %v1478 = vld [vmem:[#allocation16 + $0x58] sm:$0xff]
    %v1479 = vld [vmem:[#allocation16 + $0x60] sm:$0xff]
    %v1480 = vld [vmem:[#allocation16 + $0x68] sm:$0xff]
    %v1481 = vld [vmem:[#allocation16 + $0x70] sm:$0xff]
    %v1482 = vld [vmem:[#allocation16 + $0x78] sm:$0xff]
    %v1484 = vlaneseq
    %v1485 = vshrl.u32 %v1484, 7
    %v1486 = vsub.s32 0, %v1485
    %v1487 = vrot.slane %v1466, %v1486
    %v1488 = vlaneseq
    %v1489 = vshrl.u32 %v1488, 7
    %v1490 = vsub.s32 1, %v1489
    %v1491 = vrot.slane %v1466, %v1490
    %v1510 = vunpack.c.l.b16 %v1467
    %v1511 = vunpack.c.h.b16 %v1467
    %v1512 = vunpack.c.l.b16 %v1468
    %v1513 = vunpack.c.h.b16 %v1468
    %v1514 = vunpack.c.l.b16 %v1469
    %v1515 = vunpack.c.h.b16 %v1469
    %v1516 = vunpack.c.l.b16 %v1470
    %v1517 = vunpack.c.h.b16 %v1470
    %v1518 = vunpack.c.l.b16 %v1471
    %v1519 = vunpack.c.h.b16 %v1471
    %v1520 = vunpack.c.l.b16 %v1472
    %v1521 = vunpack.c.h.b16 %v1472
    %v1522 = vunpack.c.l.b16 %v1473
    %v1523 = vunpack.c.h.b16 %v1473
    %v1524 = vunpack.c.l.b16 %v1474
    %v1525 = vunpack.c.h.b16 %v1474
    %v1526 = vunpack.c.l.b16 %v1475
    %v1527 = vunpack.c.h.b16 %v1475
    %v1528 = vunpack.c.l.b16 %v1476
    %v1529 = vunpack.c.h.b16 %v1476
    %v1530 = vunpack.c.l.b16 %v1477
    %v1531 = vunpack.c.h.b16 %v1477
    %v1532 = vunpack.c.l.b16 %v1478
    %v1533 = vunpack.c.h.b16 %v1478
    %v1534 = vunpack.c.l.b16 %v1479
    %v1535 = vunpack.c.h.b16 %v1479
    %v1536 = vunpack.c.l.b16 %v1480
    %v1537 = vunpack.c.h.b16 %v1480
    %v1538 = vunpack.c.l.b16 %v1481
    %v1539 = vunpack.c.h.b16 %v1481
    %v1540 = vunpack.c.l.b16 %v1482
    %v1541 = vunpack.c.h.b16 %v1482
    %v1542 = vpack.c.b16 %v1512, %v1510
    %v1543 = vpack.c.b16 %v1513, %v1511
    %v1544 = vpack.c.b16 %v1516, %v1514
    %v1545 = vpack.c.b16 %v1517, %v1515
    %v1546 = vpack.c.b16 %v1520, %v1518
    %v1547 = vpack.c.b16 %v1521, %v1519
    %v1548 = vpack.c.b16 %v1524, %v1522
    %v1549 = vpack.c.b16 %v1525, %v1523
    %v1550 = vpack.c.b16 %v1528, %v1526
    %v1551 = vpack.c.b16 %v1529, %v1527
    %v1552 = vpack.c.b16 %v1532, %v1530
    %v1553 = vpack.c.b16 %v1533, %v1531
    %v1554 = vpack.c.b16 %v1536, %v1534
    %v1555 = vpack.c.b16 %v1537, %v1535
    %v1556 = vpack.c.b16 %v1540, %v1538
    %v1557 = vpack.c.b16 %v1541, %v1539
    %1574 = vmatprep.subr.bf16.mxu0 %v1557
    %1575 = vmatpush1.bf16.msra.mxu0 %v1556
    %1576 = vmatprep.subr.bf16.mxu0 %v1555
    %1577 = vmatpush1.bf16.msra.mxu0 %v1554
    %1578 = vmatprep.subr.bf16.mxu0 %v1553
    %1579 = vmatpush1.bf16.msra.mxu0 %v1552
    %1580 = vmatprep.subr.bf16.mxu0 %v1551
    %1581 = vmatpush1.bf16.msra.mxu0 %v1550
    %1582 = vmatprep.subr.bf16.mxu0 %v1549
    %1583 = vmatpush1.bf16.msra.mxu0 %v1548
    %1584 = vmatprep.subr.bf16.mxu0 %v1547
    %1585 = vmatpush1.bf16.msra.mxu0 %v1546
    %1586 = vmatprep.subr.bf16.mxu0 %v1545
    %1587 = vmatpush1.bf16.msra.mxu0 %v1544
    %1588 = vmatprep.subr.bf16.mxu0 %v1543
    %1589 = vmatpush1.bf16.msra.mxu0 %v1542
    %1590 = vmatprep.subr.bf16.mxu0 0
    %1591 = vmatpush2.bf16.msra.mxu0 0
    %1592 = vmatprep.subr.bf16.mxu0 0
    %1593 = vmatpush2.bf16.msra.mxu0 0
    %1594 = vmatprep.subr.bf16.mxu0 0
    %1595 = vmatpush2.bf16.msra.mxu0 0
    %1596 = vmatprep.subr.bf16.mxu0 0
    %1597 = vmatpush2.bf16.msra.mxu0 0
    %1598 = vmatprep.subr.bf16.mxu0 0
    %1599 = vmatpush2.bf16.msra.mxu0 0
    %1600 = vmatprep.subr.bf16.mxu0 0
    %1601 = vmatpush2.bf16.msra.mxu0 0
    %1602 = vmatprep.subr.bf16.mxu0 0
    %1603 = vmatpush2.bf16.msra.mxu0 0
    %1604 = vmatprep.subr.bf16.mxu0 0
    %1605 = vmatpush2.bf16.msra.mxu0 0
    %1606 = vmatprep.mubr.bf16.mxu0 0
    %1607 = vmatmul.mubr.bf16.gmra.mxu0 %v1462
    %v1608 = vpop.f32.mrf.mxu0
    %v1609 = vadd.f32 %v1487, %v1608
    %v1610 = vpop.f32.mrf.mxu0
    %v1611 = vadd.f32 %v1491, %v1610
    %v1612 = vpop.f32.mrf.mxu0
    %v1613 = vadd.f32 %v1487, %v1612
    %v1614 = vpop.f32.mrf.mxu0
    %v1615 = vadd.f32 %v1491, %v1614
    %1616 = vmatprep.mubr.bf16.mxu0 0
    %1617 = vmatmul.mubr.bf16.gmra.mxu0 %v1463
    %v1618 = vpop.f32.mrf.mxu0
    %v1619 = vadd.f32 %v1487, %v1618
    %v1620 = vpop.f32.mrf.mxu0
    %v1621 = vadd.f32 %v1491, %v1620
    %v1622 = vpop.f32.mrf.mxu0
    %v1623 = vadd.f32 %v1487, %v1622
    %v1624 = vpop.f32.mrf.mxu0
    %v1625 = vadd.f32 %v1491, %v1624
    %1626 = vmatprep.mubr.bf16.mxu0 0
    %1627 = vmatmul.mubr.bf16.gmra.mxu0 %v1464
    %v1628 = vpop.f32.mrf.mxu0
    %v1629 = vadd.f32 %v1487, %v1628
    %v1630 = vpop.f32.mrf.mxu0
    %v1631 = vadd.f32 %v1491, %v1630
    %v1632 = vpop.f32.mrf.mxu0
    %v1633 = vadd.f32 %v1487, %v1632
    %v1634 = vpop.f32.mrf.mxu0
    %v1635 = vadd.f32 %v1491, %v1634
    %1636 = vmatprep.mubr.bf16.mxu0 0
    %1637 = vmatmul.mubr.bf16.gmra.mxu0 %v1465
    %v1638 = vpop.f32.mrf.mxu0
    %v1639 = vadd.f32 %v1487, %v1638
    %v1640 = vpop.f32.mrf.mxu0
    %v1641 = vadd.f32 %v1491, %v1640
    %v1642 = vpop.f32.mrf.mxu0
    %v1643 = vadd.f32 %v1487, %v1642
    %v1644 = vpop.f32.mrf.mxu0
    %v1645 = vadd.f32 %v1491, %v1644
    %1646 = vdwg.mxu0
    %v1647 = vmax.f32 %v1609, 0.0
    %v1648 = vmax.f32 %v1611, 0.0
    %v1649 = vmax.f32 %v1613, 0.0
    %v1650 = vmax.f32 %v1615, 0.0
    %v1651 = vmax.f32 %v1619, 0.0
    %v1652 = vmax.f32 %v1621, 0.0
    %v1653 = vmax.f32 %v1623, 0.0
    %v1654 = vmax.f32 %v1625, 0.0
    %v1655 = vmax.f32 %v1629, 0.0
    %v1656 = vmax.f32 %v1631, 0.0
    %v1657 = vmax.f32 %v1633, 0.0
    %v1658 = vmax.f32 %v1635, 0.0
    %v1659 = vmax.f32 %v1639, 0.0
    %v1660 = vmax.f32 %v1641, 0.0
    %v1661 = vmax.f32 %v1643, 0.0
    %v1662 = vmax.f32 %v1645, 0.0
    %v1663 = vpack.c.bf16 %v1649, %v1647
    %v1664 = vpack.c.bf16 %v1650, %v1648
    %v1665 = vpack.c.bf16 %v1653, %v1651
    %v1666 = vpack.c.bf16 %v1654, %v1652
    %v1667 = vpack.c.bf16 %v1657, %v1655
    %v1668 = vpack.c.bf16 %v1658, %v1656
    %v1669 = vpack.c.bf16 %v1661, %v1659
    %v1670 = vpack.c.bf16 %v1662, %v1660
    %v1671 = vld [vmem:[%s11 + $0xb] sm:$0x1]
    %v1672 = vld [vmem:[#allocation18] sm:$0xf]
    %v1673 = vld [vmem:[#allocation18 + $0x4] sm:$0xf]
    %v1674 = vld [vmem:[#allocation18 + $0x8] sm:$0xf]
    %v1675 = vld [vmem:[#allocation18 + $0xc] sm:$0xf]
    %v1676 = vld [vmem:[#allocation18 + $0x10] sm:$0xf]
    %v1677 = vld [vmem:[#allocation18 + $0x14] sm:$0xf]
    %v1678 = vld [vmem:[#allocation18 + $0x18] sm:$0xf]
    %v1679 = vld [vmem:[#allocation18 + $0x1c] sm:$0xf]
    %v1680 = vld [vmem:[#allocation18 + $0x20] sm:$0xf]
    %v1681 = vld [vmem:[#allocation18 + $0x24] sm:$0xf]
    %v1682 = vld [vmem:[#allocation18 + $0x28] sm:$0xf]
    %v1683 = vld [vmem:[#allocation18 + $0x2c] sm:$0xf]
    %v1684 = vld [vmem:[#allocation18 + $0x30] sm:$0xf]
    %v1685 = vld [vmem:[#allocation18 + $0x34] sm:$0xf]
    %v1686 = vld [vmem:[#allocation18 + $0x38] sm:$0xf]
    %v1687 = vld [vmem:[#allocation18 + $0x3c] sm:$0xf]
    %v1688 = vld [vmem:[#allocation18 + $0x40] sm:$0xf]
    %v1689 = vld [vmem:[#allocation18 + $0x44] sm:$0xf]
    %v1690 = vld [vmem:[#allocation18 + $0x48] sm:$0xf]
    %v1691 = vld [vmem:[#allocation18 + $0x4c] sm:$0xf]
    %v1692 = vld [vmem:[#allocation18 + $0x50] sm:$0xf]
    %v1693 = vld [vmem:[#allocation18 + $0x54] sm:$0xf]
    %v1694 = vld [vmem:[#allocation18 + $0x58] sm:$0xf]
    %v1695 = vld [vmem:[#allocation18 + $0x5c] sm:$0xf]
    %v1696 = vld [vmem:[#allocation18 + $0x60] sm:$0xf]
    %v1697 = vld [vmem:[#allocation18 + $0x64] sm:$0xf]
    %v1698 = vld [vmem:[#allocation18 + $0x68] sm:$0xf]
    %v1699 = vld [vmem:[#allocation18 + $0x6c] sm:$0xf]
    %v1700 = vld [vmem:[#allocation18 + $0x70] sm:$0xf]
    %v1701 = vld [vmem:[#allocation18 + $0x74] sm:$0xf]
    %v1702 = vld [vmem:[#allocation18 + $0x78] sm:$0xf]
    %v1703 = vld [vmem:[#allocation18 + $0x7c] sm:$0xf]
    %v1705 = vlaneseq
    %v1706 = vshrl.u32 %v1705, 7
    %v1707 = vsub.s32 0, %v1706
    %v1708 = vrot.slane %v1671, %v1707
    %v1742 = vunpack.c.l.b16 %v1672
    %v1743 = vunpack.c.l.b16 %v1673
    %v1744 = vunpack.c.l.b16 %v1674
    %v1745 = vunpack.c.l.b16 %v1675
    %v1746 = vunpack.c.l.b16 %v1676
    %v1747 = vunpack.c.l.b16 %v1677
    %v1748 = vunpack.c.l.b16 %v1678
    %v1749 = vunpack.c.l.b16 %v1679
    %v1750 = vunpack.c.l.b16 %v1680
    %v1751 = vunpack.c.l.b16 %v1681
    %v1752 = vunpack.c.l.b16 %v1682
    %v1753 = vunpack.c.l.b16 %v1683
    %v1754 = vunpack.c.l.b16 %v1684
    %v1755 = vunpack.c.l.b16 %v1685
    %v1756 = vunpack.c.l.b16 %v1686
    %v1757 = vunpack.c.l.b16 %v1687
    %v1758 = vunpack.c.l.b16 %v1688
    %v1759 = vunpack.c.l.b16 %v1689
    %v1760 = vunpack.c.l.b16 %v1690
    %v1761 = vunpack.c.l.b16 %v1691
    %v1762 = vunpack.c.l.b16 %v1692
    %v1763 = vunpack.c.l.b16 %v1693
    %v1764 = vunpack.c.l.b16 %v1694
    %v1765 = vunpack.c.l.b16 %v1695
    %v1766 = vunpack.c.l.b16 %v1696
    %v1767 = vunpack.c.l.b16 %v1697
    %v1768 = vunpack.c.l.b16 %v1698
    %v1769 = vunpack.c.l.b16 %v1699
    %v1770 = vunpack.c.l.b16 %v1700
    %v1771 = vunpack.c.l.b16 %v1701
    %v1772 = vunpack.c.l.b16 %v1702
    %v1773 = vunpack.c.l.b16 %v1703
    %v1774 = vpack.c.b16 %v1743, %v1742
    %v1775 = vpack.c.b16 %v1745, %v1744
    %v1776 = vpack.c.b16 %v1747, %v1746
    %v1777 = vpack.c.b16 %v1749, %v1748
    %v1778 = vpack.c.b16 %v1751, %v1750
    %v1779 = vpack.c.b16 %v1753, %v1752
    %v1780 = vpack.c.b16 %v1755, %v1754
    %v1781 = vpack.c.b16 %v1757, %v1756
    %v1782 = vpack.c.b16 %v1759, %v1758
    %v1783 = vpack.c.b16 %v1761, %v1760
    %v1784 = vpack.c.b16 %v1763, %v1762
    %v1785 = vpack.c.b16 %v1765, %v1764
    %v1786 = vpack.c.b16 %v1767, %v1766
    %v1787 = vpack.c.b16 %v1769, %v1768
    %v1788 = vpack.c.b16 %v1771, %v1770
    %v1789 = vpack.c.b16 %v1773, %v1772
    %1806 = vmatprep.subr.bf16.mxu0 0
    %1807 = vmatpush1.bf16.msra.mxu0 %v1781
    %1808 = vmatprep.subr.bf16.mxu0 0
    %1809 = vmatpush1.bf16.msra.mxu0 %v1780
    %1810 = vmatprep.subr.bf16.mxu0 0
    %1811 = vmatpush1.bf16.msra.mxu0 %v1779
    %1812 = vmatprep.subr.bf16.mxu0 0
    %1813 = vmatpush1.bf16.msra.mxu0 %v1778
    %1814 = vmatprep.subr.bf16.mxu0 0
    %1815 = vmatpush1.bf16.msra.mxu0 %v1777
    %1816 = vmatprep.subr.bf16.mxu0 0
    %1817 = vmatpush1.bf16.msra.mxu0 %v1776
    %1818 = vmatprep.subr.bf16.mxu0 0
    %1819 = vmatpush1.bf16.msra.mxu0 %v1775
    %1820 = vmatprep.subr.bf16.mxu0 0
    %1821 = vmatpush1.bf16.msra.mxu0 %v1774
    %1822 = vmatprep.subr.bf16.mxu0 0
    %1823 = vmatpush2.bf16.msra.mxu0 %v1789
    %1824 = vmatprep.subr.bf16.mxu0 0
    %1825 = vmatpush2.bf16.msra.mxu0 %v1788
    %1826 = vmatprep.subr.bf16.mxu0 0
    %1827 = vmatpush2.bf16.msra.mxu0 %v1787
    %1828 = vmatprep.subr.bf16.mxu0 0
    %1829 = vmatpush2.bf16.msra.mxu0 %v1786
    %1830 = vmatprep.subr.bf16.mxu0 0
    %1831 = vmatpush2.bf16.msra.mxu0 %v1785
    %1832 = vmatprep.subr.bf16.mxu0 0
    %1833 = vmatpush2.bf16.msra.mxu0 %v1784
    %1834 = vmatprep.subr.bf16.mxu0 0
    %1835 = vmatpush2.bf16.msra.mxu0 %v1783
    %1836 = vmatprep.subr.bf16.mxu0 0
    %1837 = vmatpush2.bf16.msra.mxu0 %v1782
    %1838 = vmatprep.mubr.bf16.mxu0 %v1664
    %1839 = vmatmul.mubr.bf16.gmra.mxu0 %v1663
    %v1840 = vpop.f32.mrf.mxu0
    %v1841 = vadd.f32 %v1708, %v1840
    %v1842 = vpop.f32.mrf.mxu0
    %v1843 = vpop.f32.mrf.mxu0
    %v1844 = vadd.f32 %v1708, %v1843
    %v1845 = vpop.f32.mrf.mxu0
    %1846 = vmatprep.mubr.bf16.mxu0 %v1666
    %1847 = vmatmul.mubr.bf16.gmra.mxu0 %v1665
    %v1848 = vpop.f32.mrf.mxu0
    %v1849 = vadd.f32 %v1708, %v1848
    %v1850 = vpop.f32.mrf.mxu0
    %v1851 = vpop.f32.mrf.mxu0
    %v1852 = vadd.f32 %v1708, %v1851
    %v1853 = vpop.f32.mrf.mxu0
    %1854 = vmatprep.mubr.bf16.mxu0 %v1668
    %1855 = vmatmul.mubr.bf16.gmra.mxu0 %v1667
    %v1856 = vpop.f32.mrf.mxu0
    %v1857 = vadd.f32 %v1708, %v1856
    %v1858 = vpop.f32.mrf.mxu0
    %v1859 = vpop.f32.mrf.mxu0
    %v1860 = vadd.f32 %v1708, %v1859
    %v1861 = vpop.f32.mrf.mxu0
    %1862 = vmatprep.mubr.bf16.mxu0 %v1670
    %1863 = vmatmul.mubr.bf16.gmra.mxu0 %v1669
    %v1864 = vpop.f32.mrf.mxu0
    %v1865 = vadd.f32 %v1708, %v1864
    %v1866 = vpop.f32.mrf.mxu0
    %v1867 = vpop.f32.mrf.mxu0
    %v1868 = vadd.f32 %v1708, %v1867
    %v1869 = vpop.f32.mrf.mxu0
    %1870 = vdwg.mxu0
    %v1871 = vmax.f32 %v1841, 0.0
    %v1872 = vmax.f32 %v1844, 0.0
    %v1873 = vmax.f32 %v1849, 0.0
    %v1874 = vmax.f32 %v1852, 0.0
    %v1875 = vmax.f32 %v1857, 0.0
    %v1876 = vmax.f32 %v1860, 0.0
    %v1877 = vmax.f32 %v1865, 0.0
    %v1878 = vmax.f32 %v1868, 0.0
    %v1879 = vmul.f32 %v1246, 0.5
    %v1880 = vmul.f32 %v1247, 0.5
    %v1881 = vmul.f32 %v1248, 0.5
    %v1882 = vmul.f32 %v1249, 0.5
    %v1883 = vmul.f32 %v1250, 0.5
    %v1884 = vmul.f32 %v1251, 0.5
    %v1885 = vmul.f32 %v1252, 0.5
    %v1886 = vmul.f32 %v1253, 0.5
    %v1887 = vmul.f32 %v1879, 1.442695
    %v1888 = vpow.pop %v1887
    %v1889 = vmul.f32 %v1880, 1.442695
    %v1890 = vpow.pop %v1889
    %v1891 = vmul.f32 %v1881, 1.442695
    %v1892 = vpow.pop %v1891
    %v1893 = vmul.f32 %v1882, 1.442695
    %v1894 = vpow.pop %v1893
    %v1895 = vmul.f32 %v1883, 1.442695
    %v1896 = vpow.pop %v1895
    %v1897 = vmul.f32 %v1884, 1.442695
    %v1898 = vpow.pop %v1897
    %v1899 = vmul.f32 %v1885, 1.442695
    %v1900 = vpow.pop %v1899
    %v1901 = vmul.f32 %v1886, 1.442695
    %v1902 = vpow.pop %v1901
    %v1903 = vmul.f32 %v209, %v1888
    %v1904 = vmul.f32 %v210, %v1890
    %v1905 = vmul.f32 %v211, %v1892
    %v1906 = vmul.f32 %v212, %v1894
    %v1907 = vmul.f32 %v213, %v1896
    %v1908 = vmul.f32 %v214, %v1898
    %v1909 = vmul.f32 %v215, %v1900
    %v1910 = vmul.f32 %v216, %v1902
    %v1911 = vadd.f32 %v1903, %v1871
    %v1912 = vadd.f32 %v1904, %v1872
    %v1913 = vadd.f32 %v1905, %v1873
    %v1914 = vadd.f32 %v1906, %v1874
    %v1915 = vadd.f32 %v1907, %v1875
    %v1916 = vadd.f32 %v1908, %v1876
    %v1917 = vadd.f32 %v1909, %v1877
    %v1918 = vadd.f32 %v1910, %v1878
    %v1919 = vmul.f32 %v201, %v201
    %v1920 = vmul.f32 %v202, %v202
    %v1921 = vmul.f32 %v203, %v203
    %v1922 = vmul.f32 %v204, %v204
    %v1923 = vmul.f32 %v205, %v205
    %v1924 = vmul.f32 %v206, %v206
    %v1925 = vmul.f32 %v207, %v207
    %v1926 = vmul.f32 %v208, %v208
    %1927 = vadd.xlane.f32.xlu0 %v1919
    %v1928 = vpop.xlane.xlu0 %1927
    %1929 = vadd.xlane.f32.xlu0 %v1920
    %v1930 = vpop.xlane.xlu0 %1929
    %1931 = vadd.xlane.f32.xlu0 %v1921
    %v1932 = vpop.xlane.xlu0 %1931
    %1933 = vadd.xlane.f32.xlu0 %v1922
    %v1934 = vpop.xlane.xlu0 %1933
    %1935 = vadd.xlane.f32.xlu0 %v1923
    %v1936 = vpop.xlane.xlu0 %1935
    %1937 = vadd.xlane.f32.xlu0 %v1924
    %v1938 = vpop.xlane.xlu0 %1937
    %1939 = vadd.xlane.f32.xlu0 %v1925
    %v1940 = vpop.xlane.xlu0 %1939
    %1941 = vadd.xlane.f32.xlu0 %v1926
    %v1942 = vpop.xlane.xlu0 %1941
    %v1943 = vrsqrt.pop %v1928
    %v1944 = vrsqrt.pop %v1930
    %v1945 = vrsqrt.pop %v1932
    %v1946 = vrsqrt.pop %v1934
    %v1947 = vrsqrt.pop %v1936
    %v1948 = vrsqrt.pop %v1938
    %v1949 = vrsqrt.pop %v1940
    %v1950 = vrsqrt.pop %v1942
    %v1951 = vmul.f32 %v201, %v1943
    %v1952 = vmul.f32 %v202, %v1944
    %v1953 = vmul.f32 %v203, %v1945
    %v1954 = vmul.f32 %v204, %v1946
    %v1955 = vmul.f32 %v205, %v1947
    %v1956 = vmul.f32 %v206, %v1948
    %v1957 = vmul.f32 %v207, %v1949
    %v1958 = vmul.f32 %v208, %v1950
    %v1959 = vmul.f32 %v1951, 0.96
    %v1960 = vmul.f32 %v1952, 0.96
    %v1961 = vmul.f32 %v1953, 0.96
    %v1962 = vmul.f32 %v1954, 0.96
    %v1963 = vmul.f32 %v1955, 0.96
    %v1964 = vmul.f32 %v1956, 0.96
    %v1965 = vmul.f32 %v1957, 0.96
    %v1966 = vmul.f32 %v1958, 0.96
    %v1967 = vmul.f32 %v1911, %v1911
    %v1968 = vmul.f32 %v1912, %v1912
    %v1969 = vmul.f32 %v1913, %v1913
    %v1970 = vmul.f32 %v1914, %v1914
    %v1971 = vmul.f32 %v1915, %v1915
    %v1972 = vmul.f32 %v1916, %v1916
    %v1973 = vmul.f32 %v1917, %v1917
    %v1974 = vmul.f32 %v1918, %v1918
    %1975 = vadd.xlane.f32.xlu0 %v1967
    %v1976 = vpop.xlane.xlu0 %1975
    %1977 = vadd.xlane.f32.xlu0 %v1968
    %v1978 = vpop.xlane.xlu0 %1977
    %1979 = vadd.xlane.f32.xlu0 %v1969
    %v1980 = vpop.xlane.xlu0 %1979
    %1981 = vadd.xlane.f32.xlu0 %v1970
    %v1982 = vpop.xlane.xlu0 %1981
    %1983 = vadd.xlane.f32.xlu0 %v1971
    %v1984 = vpop.xlane.xlu0 %1983
    %1985 = vadd.xlane.f32.xlu0 %v1972
    %v1986 = vpop.xlane.xlu0 %1985
    %1987 = vadd.xlane.f32.xlu0 %v1973
    %v1988 = vpop.xlane.xlu0 %1987
    %1989 = vadd.xlane.f32.xlu0 %v1974
    %v1990 = vpop.xlane.xlu0 %1989
    %v1991 = vrsqrt.pop %v1976
    %v1992 = vrsqrt.pop %v1978
    %v1993 = vrsqrt.pop %v1980
    %v1994 = vrsqrt.pop %v1982
    %v1995 = vrsqrt.pop %v1984
    %v1996 = vrsqrt.pop %v1986
    %v1997 = vrsqrt.pop %v1988
    %v1998 = vrsqrt.pop %v1990
    %v1999 = vmul.f32 %v1911, %v1991
    %v2000 = vmul.f32 %v1912, %v1992
    %v2001 = vmul.f32 %v1913, %v1993
    %v2002 = vmul.f32 %v1914, %v1994
    %v2003 = vmul.f32 %v1915, %v1995
    %v2004 = vmul.f32 %v1916, %v1996
    %v2005 = vmul.f32 %v1917, %v1997
    %v2006 = vmul.f32 %v1918, %v1998
    %v2007 = vmul.f32 %v1999, 0.04
    %v2008 = vmul.f32 %v2000, 0.04
    %v2009 = vmul.f32 %v2001, 0.04
    %v2010 = vmul.f32 %v2002, 0.04
    %v2011 = vmul.f32 %v2003, 0.04
    %v2012 = vmul.f32 %v2004, 0.04
    %v2013 = vmul.f32 %v2005, 0.04
    %v2014 = vmul.f32 %v2006, 0.04
    %v2015 = vadd.f32 %v1959, %v2007
    %v2016 = vadd.f32 %v1960, %v2008
    %v2017 = vadd.f32 %v1961, %v2009
    %v2018 = vadd.f32 %v1962, %v2010
    %v2019 = vadd.f32 %v1963, %v2011
    %v2020 = vadd.f32 %v1964, %v2012
    %v2021 = vadd.f32 %v1965, %v2013
    %v2022 = vadd.f32 %v1966, %v2014
    %v2023 = vmul.f32 %v2015, %v2015
    %v2024 = vmul.f32 %v2016, %v2016
    %v2025 = vmul.f32 %v2017, %v2017
    %v2026 = vmul.f32 %v2018, %v2018
    %v2027 = vmul.f32 %v2019, %v2019
    %v2028 = vmul.f32 %v2020, %v2020
    %v2029 = vmul.f32 %v2021, %v2021
    %v2030 = vmul.f32 %v2022, %v2022
    %2031 = vadd.xlane.f32.xlu0 %v2023
    %v2032 = vpop.xlane.xlu0 %2031
    %2033 = vadd.xlane.f32.xlu0 %v2024
    %v2034 = vpop.xlane.xlu0 %2033
    %2035 = vadd.xlane.f32.xlu0 %v2025
    %v2036 = vpop.xlane.xlu0 %2035
    %2037 = vadd.xlane.f32.xlu0 %v2026
    %v2038 = vpop.xlane.xlu0 %2037
    %2039 = vadd.xlane.f32.xlu0 %v2027
    %v2040 = vpop.xlane.xlu0 %2039
    %2041 = vadd.xlane.f32.xlu0 %v2028
    %v2042 = vpop.xlane.xlu0 %2041
    %2043 = vadd.xlane.f32.xlu0 %v2029
    %v2044 = vpop.xlane.xlu0 %2043
    %2045 = vadd.xlane.f32.xlu0 %v2030
    %v2046 = vpop.xlane.xlu0 %2045
    %v2047 = vrsqrt.pop %v2032
    %v2048 = vrsqrt.pop %v2034
    %v2049 = vrsqrt.pop %v2036
    %v2050 = vrsqrt.pop %v2038
    %v2051 = vrsqrt.pop %v2040
    %v2052 = vrsqrt.pop %v2042
    %v2053 = vrsqrt.pop %v2044
    %v2054 = vrsqrt.pop %v2046
    %v2055 = vmul.f32 %v2015, %v2047
    %v2056 = vmul.f32 %v2016, %v2048
    %v2057 = vmul.f32 %v2017, %v2049
    %v2058 = vmul.f32 %v2018, %v2050
    %v2059 = vmul.f32 %v2019, %v2051
    %v2060 = vmul.f32 %v2020, %v2052
    %v2061 = vmul.f32 %v2021, %v2053
    %v2062 = vmul.f32 %v2022, %v2054
    %v2063 = vld [vmem:[#allocation2] sm:$0xff]
    %v2064 = vrot.slane %v2055, 4
    %v2065 = vadd.f32 %v2055, %v2064
    %v2066 = vrot.slane %v2065, 2
    %v2067 = vadd.f32 %v2065, %v2066
    %v2068 = vrot.slane %v2067, 1
    %v2069 = vadd.f32 %v2067, %v2068
    %v2070 = vrot.slane %v2056, 4
    %v2071 = vadd.f32 %v2056, %v2070
    %v2072 = vrot.slane %v2071, 2
    %v2073 = vadd.f32 %v2071, %v2072
    %v2074 = vrot.slane %v2073, 1
    %v2075 = vadd.f32 %v2073, %v2074
    %v2076 = vrot.slane %v2057, 4
    %v2077 = vadd.f32 %v2057, %v2076
    %v2078 = vrot.slane %v2077, 2
    %v2079 = vadd.f32 %v2077, %v2078
    %v2080 = vrot.slane %v2079, 1
    %v2081 = vadd.f32 %v2079, %v2080
    %v2082 = vrot.slane %v2058, 4
    %v2083 = vadd.f32 %v2058, %v2082
    %v2084 = vrot.slane %v2083, 2
    %v2085 = vadd.f32 %v2083, %v2084
    %v2086 = vrot.slane %v2085, 1
    %v2087 = vadd.f32 %v2085, %v2086
    %v2088 = vrot.slane %v2059, 4
    %v2089 = vadd.f32 %v2059, %v2088
    %v2090 = vrot.slane %v2089, 2
    %v2091 = vadd.f32 %v2089, %v2090
    %v2092 = vrot.slane %v2091, 1
    %v2093 = vadd.f32 %v2091, %v2092
    %v2094 = vrot.slane %v2060, 4
    %v2095 = vadd.f32 %v2060, %v2094
    %v2096 = vrot.slane %v2095, 2
    %v2097 = vadd.f32 %v2095, %v2096
    %v2098 = vrot.slane %v2097, 1
    %v2099 = vadd.f32 %v2097, %v2098
    %v2100 = vrot.slane %v2061, 4
    %v2101 = vadd.f32 %v2061, %v2100
    %v2102 = vrot.slane %v2101, 2
    %v2103 = vadd.f32 %v2101, %v2102
    %v2104 = vrot.slane %v2103, 1
    %v2105 = vadd.f32 %v2103, %v2104
    %v2106 = vrot.slane %v2062, 4
    %v2107 = vadd.f32 %v2062, %v2106
    %v2108 = vrot.slane %v2107, 2
    %v2109 = vadd.f32 %v2107, %v2108
    %v2110 = vrot.slane %v2109, 1
    %v2111 = vadd.f32 %v2109, %v2110
    %vm2120 = vcmask 1041409
    %v2121 = vsel %vm2120, %v2075, %v2069
    %vm2122 = vcmask 1042434
    %v2123 = vsel %vm2122, %v2081, %v2121
    %vm2124 = vcmask 1043459
    %v2125 = vsel %vm2124, %v2087, %v2123
    %vm2126 = vcmask 1044484
    %v2127 = vsel %vm2126, %v2093, %v2125
    %vm2128 = vcmask 1045509
    %v2129 = vsel %vm2128, %v2099, %v2127
    %vm2130 = vcmask 1046534
    %v2131 = vsel %vm2130, %v2105, %v2129
    %vm2132 = vcmask 1047559
    %v2133 = vsel %vm2132, %v2111, %v2131
    %v2135 = vadd.f32 %v2063, %v2133
    %2136 = vst [vmem:[#allocation2] sm:$0xff] %v2135
    %v2137 = vld [vmem:[#allocation3] sm:$0xff]
    %v2138 = vrot.slane %v201, 4
    %v2139 = vadd.f32 %v201, %v2138
    %v2140 = vrot.slane %v2139, 2
    %v2141 = vadd.f32 %v2139, %v2140
    %v2142 = vrot.slane %v2141, 1
    %v2143 = vadd.f32 %v2141, %v2142
    %v2144 = vrot.slane %v202, 4
    %v2145 = vadd.f32 %v202, %v2144
    %v2146 = vrot.slane %v2145, 2
    %v2147 = vadd.f32 %v2145, %v2146
    %v2148 = vrot.slane %v2147, 1
    %v2149 = vadd.f32 %v2147, %v2148
    %v2150 = vrot.slane %v203, 4
    %v2151 = vadd.f32 %v203, %v2150
    %v2152 = vrot.slane %v2151, 2
    %v2153 = vadd.f32 %v2151, %v2152
    %v2154 = vrot.slane %v2153, 1
    %v2155 = vadd.f32 %v2153, %v2154
    %v2156 = vrot.slane %v204, 4
    %v2157 = vadd.f32 %v204, %v2156
    %v2158 = vrot.slane %v2157, 2
    %v2159 = vadd.f32 %v2157, %v2158
    %v2160 = vrot.slane %v2159, 1
    %v2161 = vadd.f32 %v2159, %v2160
    %v2162 = vrot.slane %v205, 4
    %v2163 = vadd.f32 %v205, %v2162
    %v2164 = vrot.slane %v2163, 2
    %v2165 = vadd.f32 %v2163, %v2164
    %v2166 = vrot.slane %v2165, 1
    %v2167 = vadd.f32 %v2165, %v2166
    %v2168 = vrot.slane %v206, 4
    %v2169 = vadd.f32 %v206, %v2168
    %v2170 = vrot.slane %v2169, 2
    %v2171 = vadd.f32 %v2169, %v2170
    %v2172 = vrot.slane %v2171, 1
    %v2173 = vadd.f32 %v2171, %v2172
    %v2174 = vrot.slane %v207, 4
    %v2175 = vadd.f32 %v207, %v2174
    %v2176 = vrot.slane %v2175, 2
    %v2177 = vadd.f32 %v2175, %v2176
    %v2178 = vrot.slane %v2177, 1
    %v2179 = vadd.f32 %v2177, %v2178
    %v2180 = vrot.slane %v208, 4
    %v2181 = vadd.f32 %v208, %v2180
    %v2182 = vrot.slane %v2181, 2
    %v2183 = vadd.f32 %v2181, %v2182
    %v2184 = vrot.slane %v2183, 1
    %v2185 = vadd.f32 %v2183, %v2184
    %v2194 = vsel %vm2120, %v2149, %v2143
    %v2195 = vsel %vm2122, %v2155, %v2194
    %v2196 = vsel %vm2124, %v2161, %v2195
    %v2197 = vsel %vm2126, %v2167, %v2196
    %v2198 = vsel %vm2128, %v2173, %v2197
    %v2199 = vsel %vm2130, %v2179, %v2198
    %v2200 = vsel %vm2132, %v2185, %v2199
    %v2202 = vadd.f32 %v2137, %v2200
    %2203 = vst [vmem:[#allocation3] sm:$0xff] %v2202
    // Predicated region
    $region98: #{tpu_custom_call.1} parent=1 // pred_check
      %p2204 = pneg %p195
    $region99: #{tpu_custom_call.1} parent=1 // pred_check_branch
      %2206 = sbr.rel (%p2204) target = $region101
    $region100: #{tpu_custom_call.1} parent=1 // pred_region
      %v2207 = vld [vmem:[#allocation2] sm:$0xff]
      %v2208 = vmul.f32 %v2207, %v2207
      %2209 = vadd.xlane.f32.xlu0 %v2208
      %v2210 = vpop.xlane.xlu0 %2209
      %v2211 = vrsqrt.pop %v2210
      %v2212 = vmul.f32 %v2207, %v2211
      %v2213 = vld [vmem:[#allocation3] sm:$0xff]
      %v2214 = vmul.f32 %v2213, %v2213
      %2215 = vadd.xlane.f32.xlu0 %v2214
      %v2216 = vpop.xlane.xlu0 %2215
      %v2217 = vrsqrt.pop %v2216
      %v2218 = vmul.f32 %v2213, %v2217
      %v2219 = vmul.f32 %v2218, %v2212
      %2220 = vadd.xlane.f32.xlu0 %v2219
      %v2221 = vpop.xlane.xlu0 %2220
      %2222 = vst [vmem:[#allocation23] sm:$0xff] %v2221
      %v2223 = vpack.c.bf16 %v2212, %v2212
      %v2224 = vld [vmem:[%s11 + $0xc] sm:$0x3]
      %v2225 = vld [vmem:[#allocation19] sm:$0xff]
      %v2226 = vld [vmem:[#allocation19 + $0x8] sm:$0xff]
      %v2227 = vld [vmem:[#allocation19 + $0x10] sm:$0xff]
      %v2228 = vld [vmem:[#allocation19 + $0x18] sm:$0xff]
      %v2229 = vld [vmem:[#allocation19 + $0x20] sm:$0xff]
      %v2230 = vld [vmem:[#allocation19 + $0x28] sm:$0xff]
      %v2231 = vld [vmem:[#allocation19 + $0x30] sm:$0xff]
      %v2232 = vld [vmem:[#allocation19 + $0x38] sm:$0xff]
      %v2233 = vld [vmem:[#allocation19 + $0x40] sm:$0xff]
      %v2234 = vld [vmem:[#allocation19 + $0x48] sm:$0xff]
      %v2235 = vld [vmem:[#allocation19 + $0x50] sm:$0xff]
      %v2236 = vld [vmem:[#allocation19 + $0x58] sm:$0xff]
      %v2237 = vld [vmem:[#allocation19 + $0x60] sm:$0xff]
      %v2238 = vld [vmem:[#allocation19 + $0x68] sm:$0xff]
      %v2239 = vld [vmem:[#allocation19 + $0x70] sm:$0xff]
      %v2240 = vld [vmem:[#allocation19 + $0x78] sm:$0xff]
      %v2242 = vlaneseq
      %v2243 = vshrl.u32 %v2242, 7
      %v2244 = vsub.s32 0, %v2243
      %v2245 = vrot.slane %v2224, %v2244
      %v2246 = vlaneseq
      %v2247 = vshrl.u32 %v2246, 7
      %v2248 = vsub.s32 1, %v2247
      %v2249 = vrot.slane %v2224, %v2248
      %v2268 = vunpack.c.l.b16 %v2225
      %v2269 = vunpack.c.h.b16 %v2225
      %v2270 = vunpack.c.l.b16 %v2226
      %v2271 = vunpack.c.h.b16 %v2226
      %v2272 = vunpack.c.l.b16 %v2227
      %v2273 = vunpack.c.h.b16 %v2227
      %v2274 = vunpack.c.l.b16 %v2228
      %v2275 = vunpack.c.h.b16 %v2228
      %v2276 = vunpack.c.l.b16 %v2229
      %v2277 = vunpack.c.h.b16 %v2229
      %v2278 = vunpack.c.l.b16 %v2230
      %v2279 = vunpack.c.h.b16 %v2230
      %v2280 = vunpack.c.l.b16 %v2231
      %v2281 = vunpack.c.h.b16 %v2231
      %v2282 = vunpack.c.l.b16 %v2232
      %v2283 = vunpack.c.h.b16 %v2232
      %v2284 = vunpack.c.l.b16 %v2233
      %v2285 = vunpack.c.h.b16 %v2233
      %v2286 = vunpack.c.l.b16 %v2234
      %v2287 = vunpack.c.h.b16 %v2234
      %v2288 = vunpack.c.l.b16 %v2235
      %v2289 = vunpack.c.h.b16 %v2235
      %v2290 = vunpack.c.l.b16 %v2236
      %v2291 = vunpack.c.h.b16 %v2236
      %v2292 = vunpack.c.l.b16 %v2237
      %v2293 = vunpack.c.h.b16 %v2237
      %v2294 = vunpack.c.l.b16 %v2238
      %v2295 = vunpack.c.h.b16 %v2238
      %v2296 = vunpack.c.l.b16 %v2239
      %v2297 = vunpack.c.h.b16 %v2239
      %v2298 = vunpack.c.l.b16 %v2240
      %v2299 = vunpack.c.h.b16 %v2240
      %v2300 = vpack.c.b16 %v2270, %v2268
      %v2301 = vpack.c.b16 %v2271, %v2269
      %v2302 = vpack.c.b16 %v2274, %v2272
      %v2303 = vpack.c.b16 %v2275, %v2273
      %v2304 = vpack.c.b16 %v2278, %v2276
      %v2305 = vpack.c.b16 %v2279, %v2277
      %v2306 = vpack.c.b16 %v2282, %v2280
      %v2307 = vpack.c.b16 %v2283, %v2281
      %v2308 = vpack.c.b16 %v2286, %v2284
      %v2309 = vpack.c.b16 %v2287, %v2285
      %v2310 = vpack.c.b16 %v2290, %v2288
      %v2311 = vpack.c.b16 %v2291, %v2289
      %v2312 = vpack.c.b16 %v2294, %v2292
      %v2313 = vpack.c.b16 %v2295, %v2293
      %v2314 = vpack.c.b16 %v2298, %v2296
      %v2315 = vpack.c.b16 %v2299, %v2297
      %2332 = vmatprep.subr.bf16.mxu0 %v2315
      %2333 = vmatpush1.bf16.msra.mxu0 %v2314
      %2334 = vmatprep.subr.bf16.mxu0 %v2313
      %2335 = vmatpush1.bf16.msra.mxu0 %v2312
      %2336 = vmatprep.subr.bf16.mxu0 %v2311
      %2337 = vmatpush1.bf16.msra.mxu0 %v2310
      %2338 = vmatprep.subr.bf16.mxu0 %v2309
      %2339 = vmatpush1.bf16.msra.mxu0 %v2308
      %2340 = vmatprep.subr.bf16.mxu0 %v2307
      %2341 = vmatpush1.bf16.msra.mxu0 %v2306
      %2342 = vmatprep.subr.bf16.mxu0 %v2305
      %2343 = vmatpush1.bf16.msra.mxu0 %v2304
      %2344 = vmatprep.subr.bf16.mxu0 %v2303
      %2345 = vmatpush1.bf16.msra.mxu0 %v2302
      %2346 = vmatprep.subr.bf16.mxu0 %v2301
      %2347 = vmatpush1.bf16.msra.mxu0 %v2300
      %2348 = vmatprep.subr.bf16.mxu0 0
      %2349 = vmatpush2.bf16.msra.mxu0 0
      %2350 = vmatprep.subr.bf16.mxu0 0
      %2351 = vmatpush2.bf16.msra.mxu0 0
      %2352 = vmatprep.subr.bf16.mxu0 0
      %2353 = vmatpush2.bf16.msra.mxu0 0
      %2354 = vmatprep.subr.bf16.mxu0 0
      %2355 = vmatpush2.bf16.msra.mxu0 0
      %2356 = vmatprep.subr.bf16.mxu0 0
      %2357 = vmatpush2.bf16.msra.mxu0 0
      %2358 = vmatprep.subr.bf16.mxu0 0
      %2359 = vmatpush2.bf16.msra.mxu0 0
      %2360 = vmatprep.subr.bf16.mxu0 0
      %2361 = vmatpush2.bf16.msra.mxu0 0
      %2362 = vmatprep.subr.bf16.mxu0 0
      %2363 = vmatpush2.bf16.msra.mxu0 0
      %2364 = vmatprep.mubr.bf16.mxu0 0
      %2365 = vmatmul.mubr.bf16.gmra.mxu0 %v2223
      %v2366 = vpop.f32.mrf.mxu0
      %v2367 = vadd.f32 %v2245, %v2366
      %v2368 = vpop.f32.mrf.mxu0
      %v2369 = vadd.f32 %v2249, %v2368
      %v2370 = vpop.f32.mrf.mxu0
      %v2371 = vpop.f32.mrf.mxu0
      %2372 = vdwg.mxu0
      %v2373 = vmax.f32 %v2367, 0.0
      %v2374 = vmax.f32 %v2369, 0.0
      %v2375 = vpack.c.bf16 %v2373, %v2373
      %v2376 = vpack.c.bf16 %v2374, %v2374
      %v2377 = vld [vmem:[%s11 + $0xe] sm:$0x1]
      %v2378 = vld [vmem:[#allocation21] sm:$0xf]
      %v2379 = vld [vmem:[#allocation21 + $0x4] sm:$0xf]
      %v2380 = vld [vmem:[#allocation21 + $0x8] sm:$0xf]
      %v2381 = vld [vmem:[#allocation21 + $0xc] sm:$0xf]
      %v2382 = vld [vmem:[#allocation21 + $0x10] sm:$0xf]
      %v2383 = vld [vmem:[#allocation21 + $0x14] sm:$0xf]
      %v2384 = vld [vmem:[#allocation21 + $0x18] sm:$0xf]
      %v2385 = vld [vmem:[#allocation21 + $0x1c] sm:$0xf]
      %v2386 = vld [vmem:[#allocation21 + $0x20] sm:$0xf]
      %v2387 = vld [vmem:[#allocation21 + $0x24] sm:$0xf]
      %v2388 = vld [vmem:[#allocation21 + $0x28] sm:$0xf]
      %v2389 = vld [vmem:[#allocation21 + $0x2c] sm:$0xf]
      %v2390 = vld [vmem:[#allocation21 + $0x30] sm:$0xf]
      %v2391 = vld [vmem:[#allocation21 + $0x34] sm:$0xf]
      %v2392 = vld [vmem:[#allocation21 + $0x38] sm:$0xf]
      %v2393 = vld [vmem:[#allocation21 + $0x3c] sm:$0xf]
      %v2394 = vld [vmem:[#allocation21 + $0x40] sm:$0xf]
      %v2395 = vld [vmem:[#allocation21 + $0x44] sm:$0xf]
      %v2396 = vld [vmem:[#allocation21 + $0x48] sm:$0xf]
      %v2397 = vld [vmem:[#allocation21 + $0x4c] sm:$0xf]
      %v2398 = vld [vmem:[#allocation21 + $0x50] sm:$0xf]
      %v2399 = vld [vmem:[#allocation21 + $0x54] sm:$0xf]
      %v2400 = vld [vmem:[#allocation21 + $0x58] sm:$0xf]
      %v2401 = vld [vmem:[#allocation21 + $0x5c] sm:$0xf]
      %v2402 = vld [vmem:[#allocation21 + $0x60] sm:$0xf]
      %v2403 = vld [vmem:[#allocation21 + $0x64] sm:$0xf]
      %v2404 = vld [vmem:[#allocation21 + $0x68] sm:$0xf]
      %v2405 = vld [vmem:[#allocation21 + $0x6c] sm:$0xf]
      %v2406 = vld [vmem:[#allocation21 + $0x70] sm:$0xf]
      %v2407 = vld [vmem:[#allocation21 + $0x74] sm:$0xf]
      %v2408 = vld [vmem:[#allocation21 + $0x78] sm:$0xf]
      %v2409 = vld [vmem:[#allocation21 + $0x7c] sm:$0xf]
      %v2411 = vlaneseq
      %v2412 = vshrl.u32 %v2411, 7
      %v2413 = vsub.s32 0, %v2412
      %v2414 = vrot.slane %v2377, %v2413
      %v2448 = vunpack.c.l.b16 %v2378
      %v2449 = vunpack.c.l.b16 %v2379
      %v2450 = vunpack.c.l.b16 %v2380
      %v2451 = vunpack.c.l.b16 %v2381
      %v2452 = vunpack.c.l.b16 %v2382
      %v2453 = vunpack.c.l.b16 %v2383
      %v2454 = vunpack.c.l.b16 %v2384
      %v2455 = vunpack.c.l.b16 %v2385
      %v2456 = vunpack.c.l.b16 %v2386
      %v2457 = vunpack.c.l.b16 %v2387
      %v2458 = vunpack.c.l.b16 %v2388
      %v2459 = vunpack.c.l.b16 %v2389
      %v2460 = vunpack.c.l.b16 %v2390
      %v2461 = vunpack.c.l.b16 %v2391
      %v2462 = vunpack.c.l.b16 %v2392
      %v2463 = vunpack.c.l.b16 %v2393
      %v2464 = vunpack.c.l.b16 %v2394
      %v2465 = vunpack.c.l.b16 %v2395
      %v2466 = vunpack.c.l.b16 %v2396
      %v2467 = vunpack.c.l.b16 %v2397
      %v2468 = vunpack.c.l.b16 %v2398
      %v2469 = vunpack.c.l.b16 %v2399
      %v2470 = vunpack.c.l.b16 %v2400
      %v2471 = vunpack.c.l.b16 %v2401
      %v2472 = vunpack.c.l.b16 %v2402
      %v2473 = vunpack.c.l.b16 %v2403
      %v2474 = vunpack.c.l.b16 %v2404
      %v2475 = vunpack.c.l.b16 %v2405
      %v2476 = vunpack.c.l.b16 %v2406
      %v2477 = vunpack.c.l.b16 %v2407
      %v2478 = vunpack.c.l.b16 %v2408
      %v2479 = vunpack.c.l.b16 %v2409
      %v2480 = vpack.c.b16 %v2449, %v2448
      %v2481 = vpack.c.b16 %v2451, %v2450
      %v2482 = vpack.c.b16 %v2453, %v2452
      %v2483 = vpack.c.b16 %v2455, %v2454
      %v2484 = vpack.c.b16 %v2457, %v2456
      %v2485 = vpack.c.b16 %v2459, %v2458
      %v2486 = vpack.c.b16 %v2461, %v2460
      %v2487 = vpack.c.b16 %v2463, %v2462
      %v2488 = vpack.c.b16 %v2465, %v2464
      %v2489 = vpack.c.b16 %v2467, %v2466
      %v2490 = vpack.c.b16 %v2469, %v2468
      %v2491 = vpack.c.b16 %v2471, %v2470
      %v2492 = vpack.c.b16 %v2473, %v2472
      %v2493 = vpack.c.b16 %v2475, %v2474
      %v2494 = vpack.c.b16 %v2477, %v2476
      %v2495 = vpack.c.b16 %v2479, %v2478
      %2512 = vmatprep.subr.bf16.mxu0 0
      %2513 = vmatpush1.bf16.msra.mxu0 %v2487
      %2514 = vmatprep.subr.bf16.mxu0 0
      %2515 = vmatpush1.bf16.msra.mxu0 %v2486
      %2516 = vmatprep.subr.bf16.mxu0 0
      %2517 = vmatpush1.bf16.msra.mxu0 %v2485
      %2518 = vmatprep.subr.bf16.mxu0 0
      %2519 = vmatpush1.bf16.msra.mxu0 %v2484
      %2520 = vmatprep.subr.bf16.mxu0 0
      %2521 = vmatpush1.bf16.msra.mxu0 %v2483
      %2522 = vmatprep.subr.bf16.mxu0 0
      %2523 = vmatpush1.bf16.msra.mxu0 %v2482
      %2524 = vmatprep.subr.bf16.mxu0 0
      %2525 = vmatpush1.bf16.msra.mxu0 %v2481
      %2526 = vmatprep.subr.bf16.mxu0 0
      %2527 = vmatpush1.bf16.msra.mxu0 %v2480
      %2528 = vmatprep.subr.bf16.mxu0 0
      %2529 = vmatpush2.bf16.msra.mxu0 %v2495
      %2530 = vmatprep.subr.bf16.mxu0 0
      %2531 = vmatpush2.bf16.msra.mxu0 %v2494
      %2532 = vmatprep.subr.bf16.mxu0 0
      %2533 = vmatpush2.bf16.msra.mxu0 %v2493
      %2534 = vmatprep.subr.bf16.mxu0 0
      %2535 = vmatpush2.bf16.msra.mxu0 %v2492
      %2536 = vmatprep.subr.bf16.mxu0 0
      %2537 = vmatpush2.bf16.msra.mxu0 %v2491
      %2538 = vmatprep.subr.bf16.mxu0 0
      %2539 = vmatpush2.bf16.msra.mxu0 %v2490
      %2540 = vmatprep.subr.bf16.mxu0 0
      %2541 = vmatpush2.bf16.msra.mxu0 %v2489
      %2542 = vmatprep.subr.bf16.mxu0 0
      %2543 = vmatpush2.bf16.msra.mxu0 %v2488
      %2544 = vmatprep.mubr.bf16.mxu0 %v2376
      %2545 = vmatmul.mubr.bf16.gmra.mxu0 %v2375
      %v2546 = vpop.f32.mrf.mxu0
      %v2547 = vadd.f32 %v2414, %v2546
      %v2548 = vpop.f32.mrf.mxu0
      %v2549 = vpop.f32.mrf.mxu0
      %v2550 = vpop.f32.mrf.mxu0
      %2551 = vdwg.mxu0
      %v2552 = vmax.f32 %v2547, 0.0
      %2553 = vst [vmem:[#allocation22] sm:$0xff] %v2552
    $region101: #{tpu_custom_call.1} parent=1 // pred_fallthru
      _
    // Predicated region
    $region102: #{tpu_custom_call.1} parent=1 // pred_check
      _
    $region103: #{tpu_custom_call.1} parent=1 // pred_check_branch
      %2555 = sbr.rel (0) target = $region105
    $region104: #{tpu_custom_call.1} parent=1 // pred_region
      %s2557 = ssub.s32 128, 128
      %2558 = vsyncadd [#allocation6], %s2557
      %s2560 = sshll.u32 [#allocation22], 4
      %s2561 = int_to_ptr.vmem [resolvable:$true] %s2560
      %2563 = dma.vmem_to_hbm [thread:$0]  %s2561, 128, %s12, [#allocation6]
    $region105: #{tpu_custom_call.1} parent=1 // pred_fallthru
      _
    // Predicated region
    $region106: #{tpu_custom_call.1} parent=1 // pred_check
      _
    $region107: #{tpu_custom_call.1} parent=1 // pred_check_branch
      %2565 = sbr.rel (0) target = $region109
    $region108: #{tpu_custom_call.1} parent=1 // pred_region
      %s2567 = ssub.s32 128, 128
      %2568 = vsyncadd [#allocation24], %s2567
      %s2570 = sshll.u32 [#allocation23], 4
      %s2571 = int_to_ptr.vmem [resolvable:$true] %s2570
      %2573 = dma.vmem_to_hbm [thread:$0]  %s2571, 128, %s13, [#allocation24]
    $region109: #{tpu_custom_call.1} parent=1 // pred_fallthru
      _
    // Predicated region
    $region110: #{tpu_custom_call.1} parent=1 // pred_check
      _
    $region111: #{tpu_custom_call.1} parent=1 // pred_check_branch
      %2575 = sbr.rel (0) target = $region113
    $region112: #{tpu_custom_call.1} parent=1 // pred_region
      %2576 = dma.done [#allocation6], 128
    $region113: #{tpu_custom_call.1} parent=1 // pred_fallthru
      _
    // Predicated region
    $region114: #{tpu_custom_call.1} parent=1 // pred_check
      _
    $region115: #{tpu_custom_call.1} parent=1 // pred_check_branch
      %2578 = sbr.rel (0) target = $region117
    $region116: #{tpu_custom_call.1} parent=1 // pred_region
      %2579 = dma.done [#allocation24], 128
    $region117: #{tpu_custom_call.1} parent=1 // pred_fallthru
      _
    %2580 = vsyncpa [#allocation5], 1
    %2581 = vsyncpa [#allocation8], 1
    %2582 = vsyncpa [#allocation11], 1
    %2583 = vsyncpa [#allocation14], 1
    %2584 = vsyncpa [#allocation17], 1
    %2585 = vsyncpa [#allocation20], 1
    %2586 = vsyncpa [#allocation6], 1
    %2587 = vsyncpa [#allocation24], 1

</llo_original>
